<compile_context>
chip_gen: v7x
topology: tpu7x:2x2x1
jax: 0.10.0
libtpu: 0.0.40
codegen_flags: <defaults>
</compile_context>

<pallas_src>
import functools

import jax
import jax.numpy as jnp
import numpy as np
from jax.experimental import pallas as pl
from jax.experimental.pallas import tpu as pltpu


def _round_up(a, b):
    return -(-a // b) * b


def bam_flash_kernel(x_q_ref, x_kv_ref, w_q_ref, b_q_ref, w_kv_ref, b_v_ref,
                     o_ref, q_sc, m_sc, l_sc, acc_sc, *,
                     key_pad, tk, n_valid, n_pad):
    """One (batch, q-tile, kv-tile) grid step, channel-major layout.

    x_q_ref : (C, tq)    f32   resident q-side tokens (q projection + residual)
    x_kv_ref: (C, tk)    bf16  streamed kv-side tokens
    w_q_ref : (KP, C)    f32   (scale * Wq)^T, zero-padded to KP rows
    b_q_ref : (KP, 1)    f32   scale * bq, zero-padded
    w_kv_ref: (KP+C, C)  bf16  [Wk^T (zero-padded) | Wv^T]  (no biases, see wrapper)
    b_v_ref : (C, 1)     f32
    o_ref   : (C, tq)
    scratch : q (KP, tq) bf16, m/l (1, tq) f32, acc (C, tq) f32
    """
    ki = pl.program_id(2)

    @pl.when(ki == 0)
    def _init():
        # q = (scale*Wq) @ x + scale*bq   (tiny f32 matmul, once per q tile)
        q = jnp.dot(w_q_ref[...], x_q_ref[...],
                    preferred_element_type=jnp.float32) + b_q_ref[...]
        q_sc[...] = q.astype(jnp.bfloat16)
        m_sc[...] = jnp.full(m_sc.shape, -1e30, dtype=m_sc.dtype)
        l_sc[...] = jnp.zeros(l_sc.shape, dtype=l_sc.dtype)
        acc_sc[...] = jnp.zeros(acc_sc.shape, dtype=acc_sc.dtype)

    # Fused K/V projection for this kv tile: (KP+C, C) @ (C, tk) -> (KP+C, tk).
    kv = jnp.dot(w_kv_ref[...], x_kv_ref[...], preferred_element_type=jnp.float32)
    k_t = kv[0:key_pad, :]                                    # (KP, tk) f32
    v_t = kv[key_pad:, :].astype(jnp.bfloat16)                # (C,  tk) bf16

    # energy^T[m, n] = k[m] . (scale*q)[n]  -> (tk, tq); keys on sublanes,
    # queries lane-dense.  Only a tiny (KP, tk) transpose is needed.
    k_tok = jnp.transpose(k_t).astype(jnp.bfloat16)           # (tk, KP)
    s = jnp.dot(k_tok, q_sc[...], preferred_element_type=jnp.float32)   # (tk, tq) f32

    if n_pad != n_valid:   # static flag: only traced when the token axis was padded
        key_idx = ki * tk + jax.lax.broadcasted_iota(jnp.int32, (tk, 1), 0)
        s = jnp.where(key_idx < n_valid, s, -1e30)

    # Online softmax over keys (sublane axis 0); accumulation in f32.
    # TODO(synk): on v6e/v7x the exp / rescale could run in bf16 (bf16 EUP/VPU
    # paths) for ~2x elementwise throughput at production N; kept f32 here.
    m_prev = m_sc[...]
    m_new = jnp.maximum(m_prev, jnp.max(s, axis=0, keepdims=True))      # (1, tq)
    alpha = jnp.exp(m_prev - m_new)                                     # (1, tq)
    p = jnp.exp(s - m_new)                                              # (tk, tq) f32
    l_sc[...] = alpha * l_sc[...] + jnp.sum(p, axis=0, keepdims=True)
    acc_sc[...] = alpha * acc_sc[...] + jnp.dot(
        v_t, p.astype(jnp.bfloat16), preferred_element_type=jnp.float32)  # (C, tq)
    m_sc[...] = m_new

    @pl.when(ki == pl.num_programs(2) - 1)
    def _finalize():
        inv = pl.reciprocal(l_sc[...], approx=False)          # exact; (1, tq), once per q tile
        out = acc_sc[...] * inv + b_v_ref[...] + x_q_ref[...]  # +bv (sum attn == 1) + residual
        o_ref[...] = out.astype(o_ref.dtype)


def stanet_attention(x1, x2, params):
    """Equivalent of Attention(att=BAM(in_ch=C, ds=1)).forward(x1, x2)."""
    B, C, H, W = x1.shape
    HW = H * W
    N = 2 * HW
    key_ch = params["wq"].shape[1]
    scale = float(key_ch) ** -0.5
    key_pad = max(8, _round_up(key_ch, 8))          # pad key dim to a sublane multiple

    # Tile selection: tq as large as the per-generation VMEM budget comfortably
    # allows (512 is safe even on v7x's 64 MiB), tk = 256 = MXU depth on v6e/v7x.
    n128 = _round_up(N, 128)
    if n128 >= 512:
        tq, tk = 512, 256
        n_pad = _round_up(N, 512)
    else:
        tq = tk = n128
        n_pad = n128

    # Contiguous token concat (exact: full-token attention + residual is
    # permutation-equivariant over tokens) instead of the strided interleave.
    x = jnp.concatenate([x1.reshape(B, C, HW), x2.reshape(B, C, HW)], axis=-1)
    if n_pad != N:
        x = jnp.pad(x, ((0, 0), (0, 0), (0, n_pad - N)))      # padded keys masked in-kernel
    x_kv = x.astype(jnp.bfloat16)    # streamed K/V-side copy: halves HBM re-read traffic

    def pad_rows(a, rows):
        return jnp.pad(a, ((0, rows - a.shape[0]), (0, 0)))

    # q projection weights: softmax scale folded in; kept f32 (tiny + resident).
    w_q = pad_rows((params["wq"] * scale).T, key_pad).astype(jnp.float32)       # (KP, C)
    b_q = jnp.pad((params["bq"] * scale).reshape(-1), (0, key_pad - key_ch)
                  ).reshape(key_pad, 1).astype(jnp.float32)                      # (KP, 1)

    # Fused K/V projection weights, bf16 for the MXU.  Biases intentionally absent:
    #   * bk adds a per-query constant to every energy -> cancels in softmax (exact).
    #   * bv * sum(attn) = bv -> added once at finalize.
    w_kv = jnp.concatenate([pad_rows(params["wk"].T, key_pad), params["wv"].T],
                           axis=0).astype(jnp.bfloat16)                          # (KP+C, C)
    b_v = params["bv"].reshape(C, 1).astype(jnp.float32)                         # (C, 1)

    grid = (B, n_pad // tq, n_pad // tk)
    kernel = functools.partial(bam_flash_kernel, key_pad=key_pad, tk=tk,
                               n_valid=N, n_pad=n_pad)

    y = pl.pallas_call(
        kernel,
        out_shape=jax.ShapeDtypeStruct((B, C, n_pad), x1.dtype),
        grid_spec=pltpu.PrefetchScalarGridSpec(
            num_scalar_prefetch=0,
            grid=grid,
            in_specs=[
                pl.BlockSpec((None, C, tq), lambda b, qi, ki: (b, 0, qi)),   # x f32: q + residual
                pl.BlockSpec((None, C, tk), lambda b, qi, ki: (b, 0, ki)),   # x bf16: K/V stream
                pl.BlockSpec((key_pad, C), lambda b, qi, ki: (0, 0)),        # w_q (resident)
                pl.BlockSpec((key_pad, 1), lambda b, qi, ki: (0, 0)),        # b_q (resident)
                pl.BlockSpec((key_pad + C, C), lambda b, qi, ki: (0, 0)),    # w_kv (resident)
                pl.BlockSpec((C, 1), lambda b, qi, ki: (0, 0)),              # b_v (resident)
            ],
            out_specs=pl.BlockSpec((None, C, tq), lambda b, qi, ki: (b, 0, qi)),
            scratch_shapes=[
                pltpu.VMEM((key_pad, tq), jnp.bfloat16),   # q (scale folded)
                pltpu.VMEM((1, tq), jnp.float32),          # running max m
                pltpu.VMEM((1, tq), jnp.float32),          # running denom l
                pltpu.VMEM((C, tq), jnp.float32),          # unnormalized output acc
            ],
        ),
        compiler_params=pltpu.CompilerParams(
            dimension_semantics=("parallel", "parallel", "arbitrary"),
            vmem_limit_bytes=48 * 1024 * 1024,
        ),
    )(x, x_kv, w_q, b_q, w_kv, b_v)

    y1 = y[:, :, :HW].reshape(B, C, H, W)
    y2 = y[:, :, HW:N].reshape(B, C, H, W)
    return y1, y2


def reference(x1, x2, params):
    """Pure-JAX reference, faithful to the PyTorch interleaved token order."""
    B, C, H, W = x1.shape
    key_ch = params["wq"].shape[1]
    x = jnp.stack([x1, x2], axis=-1).reshape(B, C, -1)          # (B, C, N) interleaved
    xt = jnp.transpose(x, (0, 2, 1))                            # (B, N, C)
    q = xt @ params["wq"] + params["bq"]
    k = xt @ params["wk"] + params["bk"]
    v = xt @ params["wv"] + params["bv"]
    energy = jnp.einsum("bnk,bmk->bnm", q, k) * (float(key_ch) ** -0.5)
    attn = jax.nn.softmax(energy, axis=-1)
    out = jnp.einsum("bnm,bmc->bnc", attn, v) + xt
    y = jnp.transpose(out, (0, 2, 1)).reshape(B, C, H, W, 2)
    return y[..., 0], y[..., 1]


def init_params(key, C):
    key_ch = C // 8
    k1, k2, k3, k4, k5, k6 = jax.random.split(key, 6)
    # 1x1 conv weights stored as (C_in, C_out).
    return {
        "wq": 0.2 * jax.random.normal(k1, (C, key_ch), jnp.float32),
        "bq": 0.1 * jax.random.normal(k2, (1, key_ch), jnp.float32),
        "wk": 0.2 * jax.random.normal(k3, (C, key_ch), jnp.float32),
        "bk": 0.1 * jax.random.normal(k4, (1, key_ch), jnp.float32),
        "wv": 0.2 * jax.random.normal(k5, (C, C), jnp.float32),
        "bv": 0.1 * jax.random.normal(k6, (1, C), jnp.float32),
    }
    # TODO(synk): BAM's AvgPool2d(ds)/F.interpolate stages for ds > 1 are not
    # implemented (identity at ds=1, the configuration used here).


if __name__ == "__main__":
    B, C, H, W = 2, 32, 16, 16          # N = 2*H*W = 512 -> exercises the kv loop (2 steps)
    key = jax.random.PRNGKey(0)
    kx1, kx2, kp = jax.random.split(key, 3)
    x1 = jax.random.normal(kx1, (B, C, H, W), jnp.float32)
    x2 = jax.random.normal(kx2, (B, C, H, W), jnp.float32)
    params = init_params(kp, C)

    y1, y2 = stanet_attention(x1, x2, params)
    (y1, y2) = jax.block_until_ready((y1, y2))

    r1, r2 = reference(x1, x2, params)
    # bf16 K/V streaming + bf16 MXU operands (f32 accumulation) vs an all-f32
    # reference: ~1e-2 absolute deviations are expected; 2.5e-2 tolerance.
    np.testing.assert_allclose(np.asarray(y1), np.asarray(r1), rtol=2.5e-2, atol=2.5e-2)
    np.testing.assert_allclose(np.asarray(y2), np.asarray(r2), rtol=2.5e-2, atol=2.5e-2)

    print("KERNEL_OK")
</pallas_src>

<mosaic_0001>
module attributes {stable_mosaic.version = 11 : i64} {
  func.func @bam_flash_kernel(%arg0: i32, %arg1: i32, %arg2: i32, %arg3: memref<1x32x512xf32, #tpu.memory_space<vmem>>, %arg4: memref<1x32x256xbf16, #tpu.memory_space<vmem>>, %arg5: memref<8x32xf32, #tpu.memory_space<vmem>>, %arg6: memref<8x1xf32, #tpu.memory_space<vmem>>, %arg7: memref<40x32xbf16, #tpu.memory_space<vmem>>, %arg8: memref<32x1xf32, #tpu.memory_space<vmem>>, %arg9: memref<1x32x512xf32, #tpu.memory_space<vmem>>, %arg10: memref<8x512xbf16, #tpu.memory_space<vmem>>, %arg11: memref<1x512xf32, #tpu.memory_space<vmem>>, %arg12: memref<1x512xf32, #tpu.memory_space<vmem>>, %arg13: memref<32x512xf32, #tpu.memory_space<vmem>>) attributes {dimension_semantics = [#tpu.dimension_semantics<parallel>, #tpu.dimension_semantics<parallel>, #tpu.dimension_semantics<arbitrary>], iteration_bounds = array<i64: 2, 1, 2>, scalar_prefetch = 0 : i64, scratch_operands = 4 : i64, tpu.core_type = #tpu.core_type<tc>, window_params = [{transform_indices = @transform_0, window_bounds = array<i64: 1, 32, 512>}, {transform_indices = @transform_1, window_bounds = array<i64: 1, 32, 256>}, {pipeline_mode = #tpu.pipeline_mode<synchronous>, transform_indices = @transform_2, window_bounds = array<i64: 8, 32>}, {pipeline_mode = #tpu.pipeline_mode<synchronous>, transform_indices = @transform_3, window_bounds = array<i64: 8, 1>}, {pipeline_mode = #tpu.pipeline_mode<synchronous>, transform_indices = @transform_4, window_bounds = array<i64: 40, 32>}, {pipeline_mode = #tpu.pipeline_mode<synchronous>, transform_indices = @transform_5, window_bounds = array<i64: 32, 1>}, {transform_indices = @transform_6, window_bounds = array<i64: 1, 32, 512>}]} {
    %c0_i32 = arith.constant 0 : i32
    %0 = arith.cmpi eq, %arg2, %c0_i32 : i32
    %1 = arith.extui %0 : i1 to i32
    %c0_i32_0 = arith.constant 0 : i32
    %2 = arith.cmpi ne, %1, %c0_i32_0 : i32
    scf.if %2 {
      %c0_24 = arith.constant 0 : index
      %c0_25 = arith.constant 0 : index
      %40 = vector.load %arg5[%c0_24, %c0_25] : memref<8x32xf32, #tpu.memory_space<vmem>>, vector<8x32xf32>
      %c0_26 = arith.constant 0 : index
      %c0_27 = arith.constant 0 : index
      %c0_28 = arith.constant 0 : index
      %41 = vector.load %arg3[%c0_26, %c0_27, %c0_28] : memref<1x32x512xf32, #tpu.memory_space<vmem>>, vector<1x32x512xf32>
      %42 = vector.shape_cast %41 : vector<1x32x512xf32> to vector<32x512xf32>
      %cst_29 = arith.constant dense<0.000000e+00> : vector<8x512xf32>
      %43 = tpu.matmul %40, %42, %cst_29 {dimension_numbers = #tpu.dot_dimension_numbers<[1], [0], [0], [1], [0, 0, 1, 1], [], []>} : vector<8x32xf32>, vector<32x512xf32>, vector<8x512xf32> -> vector<8x512xf32>
      %c0_30 = arith.constant 0 : index
      %c0_31 = arith.constant 0 : index
      %44 = vector.load %arg6[%c0_30, %c0_31] : memref<8x1xf32, #tpu.memory_space<vmem>>, vector<8x1xf32>
      %45 = vector.broadcast %44 : vector<8x1xf32> to vector<8x512xf32>
      %46 = arith.addf %43, %45 : vector<8x512xf32>
      %47 = arith.truncf %46 : vector<8x512xf32> to vector<8x512xbf16>
      %c0_32 = arith.constant 0 : index
      %c0_33 = arith.constant 0 : index
      %48 = vector.load %arg10[%c0_32, %c0_33] : memref<8x512xbf16, #tpu.memory_space<vmem>>, vector<8x512xbf16>
      tpu.vector_store %arg10[%c0_32, %c0_33], %47 {strides = array<i32>} : memref<8x512xbf16, #tpu.memory_space<vmem>>, vector<8x512xbf16>,
      %cst_34 = arith.constant -1.000000e+30 : f32
      %49 = vector.broadcast %cst_34 : f32 to vector<1x512xf32>
      %c0_35 = arith.constant 0 : index
      %c0_36 = arith.constant 0 : index
      %50 = vector.load %arg11[%c0_35, %c0_36] : memref<1x512xf32, #tpu.memory_space<vmem>>, vector<1x512xf32>
      tpu.vector_store %arg11[%c0_35, %c0_36], %49 {strides = array<i32>} : memref<1x512xf32, #tpu.memory_space<vmem>>, vector<1x512xf32>,
      %cst_37 = arith.constant 0.000000e+00 : f32
      %51 = vector.broadcast %cst_37 : f32 to vector<1x512xf32>
      %c0_38 = arith.constant 0 : index
      %c0_39 = arith.constant 0 : index
      %52 = vector.load %arg12[%c0_38, %c0_39] : memref<1x512xf32, #tpu.memory_space<vmem>>, vector<1x512xf32>
      tpu.vector_store %arg12[%c0_38, %c0_39], %51 {strides = array<i32>} : memref<1x512xf32, #tpu.memory_space<vmem>>, vector<1x512xf32>,
      %cst_40 = arith.constant 0.000000e+00 : f32
      %53 = vector.broadcast %cst_40 : f32 to vector<32x512xf32>
      %c0_41 = arith.constant 0 : index
      %c0_42 = arith.constant 0 : index
      %54 = vector.load %arg13[%c0_41, %c0_42] : memref<32x512xf32, #tpu.memory_space<vmem>>, vector<32x512xf32>
      tpu.vector_store %arg13[%c0_41, %c0_42], %53 {strides = array<i32>} : memref<32x512xf32, #tpu.memory_space<vmem>>, vector<32x512xf32>,
    } else {
    }
    %c0 = arith.constant 0 : index
    %c0_1 = arith.constant 0 : index
    %3 = vector.load %arg7[%c0, %c0_1] : memref<40x32xbf16, #tpu.memory_space<vmem>>, vector<40x32xbf16>
    %c0_2 = arith.constant 0 : index
    %c0_3 = arith.constant 0 : index
    %c0_4 = arith.constant 0 : index
    %4 = vector.load %arg4[%c0_2, %c0_3, %c0_4] : memref<1x32x256xbf16, #tpu.memory_space<vmem>>, vector<1x32x256xbf16>
    %5 = vector.shape_cast %4 : vector<1x32x256xbf16> to vector<32x256xbf16>
    %cst = arith.constant dense<0.000000e+00> : vector<40x256xf32>
    %6 = tpu.matmul %3, %5, %cst {dimension_numbers = #tpu.dot_dimension_numbers<[1], [0], [0], [1], [0, 0, 1, 1], [], []>} : vector<40x32xbf16>, vector<32x256xbf16>, vector<40x256xf32> -> vector<40x256xf32>
    %7 = vector.extract_strided_slice %6 {offsets = [0, 0], sizes = [8, 256], strides = [1, 1]} : vector<40x256xf32> to vector<8x256xf32>
    %8 = vector.extract_strided_slice %6 {offsets = [8, 0], sizes = [32, 256], strides = [1, 1]} : vector<40x256xf32> to vector<32x256xf32>
    %9 = arith.truncf %8 : vector<32x256xf32> to vector<32x256xbf16>
    %10 = tpu.transpose %7, [1, 0] : vector<8x256xf32> -> vector<256x8xf32>
    %11 = arith.truncf %10 : vector<256x8xf32> to vector<256x8xbf16>
    %c0_5 = arith.constant 0 : index
    %c0_6 = arith.constant 0 : index
    %12 = vector.load %arg10[%c0_5, %c0_6] : memref<8x512xbf16, #tpu.memory_space<vmem>>, vector<8x512xbf16>
    %cst_7 = arith.constant dense<0.000000e+00> : vector<256x512xf32>
    %13 = tpu.matmul %11, %12, %cst_7 {dimension_numbers = #tpu.dot_dimension_numbers<[1], [0], [0], [1], [0, 0, 1, 1], [], []>} : vector<256x8xbf16>, vector<8x512xbf16>, vector<256x512xf32> -> vector<256x512xf32>
    %c0_8 = arith.constant 0 : index
    %c0_9 = arith.constant 0 : index
    %14 = vector.load %arg11[%c0_8, %c0_9] : memref<1x512xf32, #tpu.memory_space<vmem>>, vector<1x512xf32>
    %cst_10 = arith.constant dense<0xFF800000> : vector<512xf32>
    %15 = vector.multi_reduction <maximumf>, %13, %cst_10 [0] : vector<256x512xf32> to vector<512xf32>
    %16 = vector.shape_cast %15 : vector<512xf32> to vector<1x512xf32>
    %17 = arith.maximumf %14, %16 : vector<1x512xf32>
    %18 = arith.subf %14, %17 : vector<1x512xf32>
    %19 = math.exp %18 : vector<1x512xf32>
    %20 = vector.broadcast %17 : vector<1x512xf32> to vector<256x512xf32>
    %21 = arith.subf %13, %20 : vector<256x512xf32>
    %22 = math.exp %21 : vector<256x512xf32>
    %c0_11 = arith.constant 0 : index
    %c0_12 = arith.constant 0 : index
    %23 = vector.load %arg12[%c0_11, %c0_12] : memref<1x512xf32, #tpu.memory_space<vmem>>, vector<1x512xf32>
    %24 = arith.mulf %19, %23 : vector<1x512xf32>
    %cst_13 = arith.constant dense<0.000000e+00> : vector<512xf32>
    %25 = vector.multi_reduction <add>, %22, %cst_13 [0] : vector<256x512xf32> to vector<512xf32>
    %26 = vector.shape_cast %25 : vector<512xf32> to vector<1x512xf32>
    %27 = arith.addf %24, %26 : vector<1x512xf32>
    %c0_14 = arith.constant 0 : index
    %c0_15 = arith.constant 0 : index
    %28 = vector.load %arg12[%c0_14, %c0_15] : memref<1x512xf32, #tpu.memory_space<vmem>>, vector<1x512xf32>
    tpu.vector_store %arg12[%c0_14, %c0_15], %27 {strides = array<i32>} : memref<1x512xf32, #tpu.memory_space<vmem>>, vector<1x512xf32>,
    %c0_16 = arith.constant 0 : index
    %c0_17 = arith.constant 0 : index
    %29 = vector.load %arg13[%c0_16, %c0_17] : memref<32x512xf32, #tpu.memory_space<vmem>>, vector<32x512xf32>
    %30 = vector.broadcast %19 : vector<1x512xf32> to vector<32x512xf32>
    %31 = arith.mulf %30, %29 : vector<32x512xf32>
    %32 = arith.truncf %22 : vector<256x512xf32> to vector<256x512xbf16>
    %cst_18 = arith.constant dense<0.000000e+00> : vector<32x512xf32>
    %33 = tpu.matmul %9, %32, %cst_18 {dimension_numbers = #tpu.dot_dimension_numbers<[1], [0], [0], [1], [0, 0, 1, 1], [], []>} : vector<32x256xbf16>, vector<256x512xbf16>, vector<32x512xf32> -> vector<32x512xf32>
    %34 = arith.addf %31, %33 : vector<32x512xf32>
    %c0_19 = arith.constant 0 : index
    %c0_20 = arith.constant 0 : index
    %35 = vector.load %arg13[%c0_19, %c0_20] : memref<32x512xf32, #tpu.memory_space<vmem>>, vector<32x512xf32>
    tpu.vector_store %arg13[%c0_19, %c0_20], %34 {strides = array<i32>} : memref<32x512xf32, #tpu.memory_space<vmem>>, vector<32x512xf32>,
    %c0_21 = arith.constant 0 : index
    %c0_22 = arith.constant 0 : index
    %36 = vector.load %arg11[%c0_21, %c0_22] : memref<1x512xf32, #tpu.memory_space<vmem>>, vector<1x512xf32>
    tpu.vector_store %arg11[%c0_21, %c0_22], %17 {strides = array<i32>} : memref<1x512xf32, #tpu.memory_space<vmem>>, vector<1x512xf32>,
    %c1_i32 = arith.constant 1 : i32
    %37 = arith.cmpi eq, %arg2, %c1_i32 : i32
    %38 = arith.extui %37 : i1 to i32
    %c0_i32_23 = arith.constant 0 : i32
    %39 = arith.cmpi ne, %38, %c0_i32_23 : i32
    scf.if %39 {
      %c0_24 = arith.constant 0 : index
      %c0_25 = arith.constant 0 : index
      %40 = vector.load %arg12[%c0_24, %c0_25] : memref<1x512xf32, #tpu.memory_space<vmem>>, vector<1x512xf32>
      %41 = tpu.reciprocal %40 : vector<1x512xf32> -> vector<1x512xf32>
      %c0_26 = arith.constant 0 : index
      %c0_27 = arith.constant 0 : index
      %42 = vector.load %arg13[%c0_26, %c0_27] : memref<32x512xf32, #tpu.memory_space<vmem>>, vector<32x512xf32>
      %43 = vector.broadcast %41 : vector<1x512xf32> to vector<32x512xf32>
      %44 = arith.mulf %42, %43 : vector<32x512xf32>
      %c0_28 = arith.constant 0 : index
      %c0_29 = arith.constant 0 : index
      %45 = vector.load %arg8[%c0_28, %c0_29] : memref<32x1xf32, #tpu.memory_space<vmem>>, vector<32x1xf32>
      %46 = vector.broadcast %45 : vector<32x1xf32> to vector<32x512xf32>
      %47 = arith.addf %44, %46 : vector<32x512xf32>
      %c0_30 = arith.constant 0 : index
      %c0_31 = arith.constant 0 : index
      %c0_32 = arith.constant 0 : index
      %48 = vector.load %arg3[%c0_30, %c0_31, %c0_32] : memref<1x32x512xf32, #tpu.memory_space<vmem>>, vector<1x32x512xf32>
      %49 = vector.shape_cast %48 : vector<1x32x512xf32> to vector<32x512xf32>
      %50 = arith.addf %47, %49 : vector<32x512xf32>
      %c0_33 = arith.constant 0 : index
      %c0_34 = arith.constant 0 : index
      %c0_35 = arith.constant 0 : index
      %51 = vector.load %arg9[%c0_33, %c0_34, %c0_35] : memref<1x32x512xf32, #tpu.memory_space<vmem>>, vector<1x32x512xf32>
      %52 = vector.shape_cast %51 : vector<1x32x512xf32> to vector<32x512xf32>
      %53 = vector.shape_cast %50 : vector<32x512xf32> to vector<1x32x512xf32>
      tpu.vector_store %arg9[%c0_33, %c0_34, %c0_35], %53 {strides = array<i32>} : memref<1x32x512xf32, #tpu.memory_space<vmem>>, vector<1x32x512xf32>,
    } else {
    }
    return
  }
  func.func @transform_0(%arg0: i32, %arg1: i32, %arg2: i32) -> (i32, i32, i32) {
    %c0_i32 = arith.constant 0 : i32
    %c0_i32_0 = arith.constant 0 : i32
    return %arg0, %c0_i32, %arg1 : i32, i32, i32
  }
  func.func @transform_1(%arg0: i32, %arg1: i32, %arg2: i32) -> (i32, i32, i32) {
    %c0_i32 = arith.constant 0 : i32
    %c0_i32_0 = arith.constant 0 : i32
    return %arg0, %c0_i32, %arg2 : i32, i32, i32
  }
  func.func @transform_2(%arg0: i32, %arg1: i32, %arg2: i32) -> (i32, i32) {
    %c0_i32 = arith.constant 0 : i32
    %c0_i32_0 = arith.constant 0 : i32
    %c0_i32_1 = arith.constant 0 : i32
    return %c0_i32, %c0_i32_0 : i32, i32
  }
  func.func @transform_3(%arg0: i32, %arg1: i32, %arg2: i32) -> (i32, i32) {
    %c0_i32 = arith.constant 0 : i32
    %c0_i32_0 = arith.constant 0 : i32
    %c0_i32_1 = arith.constant 0 : i32
    return %c0_i32, %c0_i32_0 : i32, i32
  }
  func.func @transform_4(%arg0: i32, %arg1: i32, %arg2: i32) -> (i32, i32) {
    %c0_i32 = arith.constant 0 : i32
    %c0_i32_0 = arith.constant 0 : i32
    %c0_i32_1 = arith.constant 0 : i32
    return %c0_i32, %c0_i32_0 : i32, i32
  }
  func.func @transform_5(%arg0: i32, %arg1: i32, %arg2: i32) -> (i32, i32) {
    %c0_i32 = arith.constant 0 : i32
    %c0_i32_0 = arith.constant 0 : i32
    %c0_i32_1 = arith.constant 0 : i32
    return %c0_i32, %c0_i32_0 : i32, i32
  }
  func.func @transform_6(%arg0: i32, %arg1: i32, %arg2: i32) -> (i32, i32, i32) {
    %c0_i32 = arith.constant 0 : i32
    %c0_i32_0 = arith.constant 0 : i32
    return %arg0, %c0_i32, %arg1 : i32, i32, i32
  }
}

</mosaic_0001>

<llo_original>
// kernel: tpu_custom_call.1
$region0: #{tpu_custom_call.1}
  #allocation0 [shape = 'u32[]', space=smem, size = 0x4, offset = 0x4, fixed_abs, tag = 'smem constant byte address 0x4 - core index']
  #allocation1 [shape = 'u32[144,128]{1,0:T(1,128)}', space=vmem, size = 0x12000, scoped, tag = 'internal scratch']
  #allocation2 [shape = 'bf16[8,512]{1,0:T(8,128)(2,1)}', space=vmem, size = 0x2000, scoped, tag = 'scratch operand']
  #allocation3 [shape = 'f32[1,512]{1,0:T(1,128)}', space=vmem, size = 0x800, scoped, tag = 'scratch operand']
  #allocation4 [shape = 'f32[1,512]{1,0:T(1,128)}', space=vmem, size = 0x800, scoped, tag = 'scratch operand']
  #allocation5 [shape = 'f32[32,512]{1,0:T(8,128)}', space=vmem, size = 0x10000, scoped, tag = 'scratch operand']
  %s0 = inlined_call_operand.hbm [shape: f32[2,32,512], index: 0, kind: input, shape index: {}]
  %s1 = inlined_call_operand.hbm [shape: bf16[2,32,512], index: 1, kind: input, shape index: {}]
  %s2 = inlined_call_operand.vmem [shape: f32[8,32], index: 2, kind: input, shape index: {}]
  %s3 = inlined_call_operand.vmem [shape: f32[8,1], index: 3, kind: input, shape index: {}]
  %s4 = inlined_call_operand.vmem [shape: bf16[40,32], index: 4, kind: input, shape index: {}]
  %s5 = inlined_call_operand.vmem [shape: f32[32,1], index: 5, kind: input, shape index: {}]
  %s6 = inlined_call_operand.hbm [shape: f32[2,32,512], index: 6, kind: output, shape index: {}]
  %s7 = sld [smem:[#allocation0]]
  $region73: #{tpu_custom_call.1} parent=0
    _
  %s9 = ssub.s32 1, %s7
  %s10 = scalar_select 0, %s9, %s7
  $region1: #{tpu_custom_call.1} parent=0
    #allocation6 [shape = 'u8[131072]{0}', space=vmem, size = 0x20000, scoped, tag = 'input window, operand 0']
    #allocation7 [shape = 's32[2]{0}', space=sflag, size = 0x8, scoped, tag = 'scoped memory for tpu_custom_call.1']
    #allocation8 [shape = 's32[2]{0}', space=sflag, size = 0x8, scoped, tag = 'scoped memory for tpu_custom_call.1']
    #allocation9 [shape = 'u8[32768]{0}', space=vmem, size = 0x8000, scoped, tag = 'input window, operand 1']
    #allocation10 [shape = 's32[2]{0}', space=sflag, size = 0x8, scoped, tag = 'scoped memory for tpu_custom_call.1']
    #allocation11 [shape = 'u8[131072]{0}', space=vmem, size = 0x20000, scoped, tag = 'output window, operand 0']
    %11 = vsyncpa [#allocation7], 0
    %s12 = scalar_lea.sflag [#allocation7], 1
    %13 = vsyncpa %s12, 0
    %14 = vsyncpa [#allocation10], 0
    %s15 = scalar_lea.sflag [#allocation10], 1
    %16 = vsyncpa %s15, 0
    %17 = vsyncpa [#allocation8], 0
    %s18 = scalar_lea.sflag [#allocation8], 1
    %19 = vsyncpa %s18, 0
    loop: start=0, step=1, limit=6
    $region2: #{tpu_custom_call.1} parent=1 // loop_pre_header
      _
    $region3: #{tpu_custom_call.1} parent=1 // loop_header
      %s21 = sphi 0, %s25
      %p22 = scmp.ge.s32.totalorder %s21, 6
      %s28 = sphi 0, %s47
      %s29 = sphi 0, %s43
      %s30 = sphi 0, %s39
      %s31 = sphi 0, %s28
      %s32 = sphi 0, %s29
      %s33 = sphi 0, %s30
      %s34 = sphi 0, %s31
      %s35 = sphi 0, %s32
      %s36 = sphi 0, %s33
      %s52 = sphi 0, %s54
      %s55 = sphi 0, %s52
      %s56 = sphi 0, %s55
      %s72 = sphi 0, %s56
      %s80 = sphi 0, %s82
      %s83 = sphi 0, %s80
      %s84 = sphi 0, %s83
      %s100 = sphi 0, %s84
      %s104 = sphi 0, %s104
      %s106 = sphi 0, %s104
      %s107 = sphi 0, %s106
      %s121 = sphi 0, %s107
      %s125 = sphi 0, %s125
      %s127 = sphi 0, %s125
      %s128 = sphi 0, %s127
      %s142 = sphi 0, %s128
      %s146 = sphi 0, %s146
      %s148 = sphi 0, %s146
      %s149 = sphi 0, %s148
      %s163 = sphi 0, %s149
      %s167 = sphi 0, %s167
      %s169 = sphi 0, %s167
      %s170 = sphi 0, %s169
      %s184 = sphi 0, %s170
      %s192 = sphi 0, %s194
      %s195 = sphi 0, %s192
      %s196 = sphi 0, %s195
      %s212 = sphi 0, %s196
    $region4: #{tpu_custom_call.1} parent=1 // loop_header_branch
      %24 = sbr.rel (%p22) target = $region8
    $region5: #{tpu_custom_call.1} parent=1 // loop_body
      %s26 = ssub.s32 %s21, 1
      %s27 = ssub.s32 %s21, 2
      %s37 = sadd.s32 1, %s30
      %p38 = scmp.ge.s32.totalorder %s37, 2
      %s39 = scalar_select %p38, 0, %s37
      %s40 = sadd.s32 1, %s29
      %s41 = scalar_select %p38, %s40, %s29
      %p42 = scmp.ge.s32.totalorder %s41, 1
      %s43 = scalar_select %p42, 0, %s41
      %s44 = sadd.s32 1, %s28
      %s45 = scalar_select %p42, %s44, %s28
      %p46 = scmp.ge.s32.totalorder %s45, 2
      %s47 = scalar_select %p46, 0, %s45
      %s48 = ssub.s32 %s28, %s47
      %s49 = ssub.s32 %s29, %s43
      %s50 = sor.u32 %s48, %s49
      %p51 = scmp.eq.s32.totalorder %s50, 0
      %s53 = sadd.s32 %s52, 1
      %s54 = scalar_select %p51, %s52, %s53
      %p57 = pneg %p51
      %p58 = scmp.eq.s32.totalorder %s21, 3
      %p59 = por %p57, %p58
      %p60 = scmp.ne.s32.totalorder %s52, %s55
      %p61 = scmp.eq.s32.totalorder %s21, 0
      %p62 = por %p60, %p61
      %p63 = scmp.ne.s32.totalorder %s52, %s55
      %p64 = scmp.eq.s32.totalorder %s26, 3
      %p65 = por %p63, %p64
      %p66 = scmp.ne.s32.totalorder %s55, %s56
      %p67 = scmp.eq.s32.totalorder %s26, 0
      %p68 = por %p66, %p67
      %p69 = scmp.ne.s32.totalorder %s55, %s56
      %p70 = scmp.eq.s32.totalorder %s27, 3
      %p71 = por %p69, %p70
      %p73 = scmp.ne.s32.totalorder %s56, %s72
      %p74 = scmp.eq.s32.totalorder %s27, 0
      %p75 = por %p73, %p74
      %s76 = ssub.s32 %s28, %s47
      %s77 = ssub.s32 %s30, %s39
      %s78 = sor.u32 %s76, %s77
      %p79 = scmp.eq.s32.totalorder %s78, 0
      %s81 = sadd.s32 %s80, 1
      %s82 = scalar_select %p79, %s80, %s81
      %p85 = pneg %p79
      %p86 = scmp.eq.s32.totalorder %s21, 3
      %p87 = por %p85, %p86
      %p88 = scmp.ne.s32.totalorder %s80, %s83
      %p89 = scmp.eq.s32.totalorder %s21, 0
      %p90 = por %p88, %p89
      %p91 = scmp.ne.s32.totalorder %s80, %s83
      %p92 = scmp.eq.s32.totalorder %s26, 3
      %p93 = por %p91, %p92
      %p94 = scmp.ne.s32.totalorder %s83, %s84
      %p95 = scmp.eq.s32.totalorder %s26, 0
      %p96 = por %p94, %p95
      %p97 = scmp.ne.s32.totalorder %s83, %s84
      %p98 = scmp.eq.s32.totalorder %s27, 3
      %p99 = por %p97, %p98
      %p101 = scmp.ne.s32.totalorder %s84, %s100
      %p102 = scmp.eq.s32.totalorder %s27, 0
      %p103 = por %p101, %p102
      %s105 = sadd.s32 %s104, 1
      %p108 = scmp.eq.s32.totalorder %s21, 3
      %p109 = scmp.ne.s32.totalorder %s104, %s106
      %p110 = scmp.eq.s32.totalorder %s21, 0
      %p111 = por %p109, %p110
      %p112 = scmp.ne.s32.totalorder %s104, %s106
      %p113 = scmp.eq.s32.totalorder %s26, 3
      %p114 = por %p112, %p113
      %p115 = scmp.ne.s32.totalorder %s106, %s107
      %p116 = scmp.eq.s32.totalorder %s26, 0
      %p117 = por %p115, %p116
      %p118 = scmp.ne.s32.totalorder %s106, %s107
      %p119 = scmp.eq.s32.totalorder %s27, 3
      %p120 = por %p118, %p119
      %p122 = scmp.ne.s32.totalorder %s107, %s121
      %p123 = scmp.eq.s32.totalorder %s27, 0
      %p124 = por %p122, %p123
      %s126 = sadd.s32 %s125, 1
      %p129 = scmp.eq.s32.totalorder %s21, 3
      %p130 = scmp.ne.s32.totalorder %s125, %s127
      %p131 = scmp.eq.s32.totalorder %s21, 0
      %p132 = por %p130, %p131
      %p133 = scmp.ne.s32.totalorder %s125, %s127
      %p134 = scmp.eq.s32.totalorder %s26, 3
      %p135 = por %p133, %p134
      %p136 = scmp.ne.s32.totalorder %s127, %s128
      %p137 = scmp.eq.s32.totalorder %s26, 0
      %p138 = por %p136, %p137
      %p139 = scmp.ne.s32.totalorder %s127, %s128
      %p140 = scmp.eq.s32.totalorder %s27, 3
      %p141 = por %p139, %p140
      %p143 = scmp.ne.s32.totalorder %s128, %s142
      %p144 = scmp.eq.s32.totalorder %s27, 0
      %p145 = por %p143, %p144
      %s147 = sadd.s32 %s146, 1
      %p150 = scmp.eq.s32.totalorder %s21, 3
      %p151 = scmp.ne.s32.totalorder %s146, %s148
      %p152 = scmp.eq.s32.totalorder %s21, 0
      %p153 = por %p151, %p152
      %p154 = scmp.ne.s32.totalorder %s146, %s148
      %p155 = scmp.eq.s32.totalorder %s26, 3
      %p156 = por %p154, %p155
      %p157 = scmp.ne.s32.totalorder %s148, %s149
      %p158 = scmp.eq.s32.totalorder %s26, 0
      %p159 = por %p157, %p158
      %p160 = scmp.ne.s32.totalorder %s148, %s149
      %p161 = scmp.eq.s32.totalorder %s27, 3
      %p162 = por %p160, %p161
      %p164 = scmp.ne.s32.totalorder %s149, %s163
      %p165 = scmp.eq.s32.totalorder %s27, 0
      %p166 = por %p164, %p165
      %s168 = sadd.s32 %s167, 1
      %p171 = scmp.eq.s32.totalorder %s21, 3
      %p172 = scmp.ne.s32.totalorder %s167, %s169
      %p173 = scmp.eq.s32.totalorder %s21, 0
      %p174 = por %p172, %p173
      %p175 = scmp.ne.s32.totalorder %s167, %s169
      %p176 = scmp.eq.s32.totalorder %s26, 3
      %p177 = por %p175, %p176
      %p178 = scmp.ne.s32.totalorder %s169, %s170
      %p179 = scmp.eq.s32.totalorder %s26, 0
      %p180 = por %p178, %p179
      %p181 = scmp.ne.s32.totalorder %s169, %s170
      %p182 = scmp.eq.s32.totalorder %s27, 3
      %p183 = por %p181, %p182
      %p185 = scmp.ne.s32.totalorder %s170, %s184
      %p186 = scmp.eq.s32.totalorder %s27, 0
      %p187 = por %p185, %p186
      %s188 = ssub.s32 %s28, %s47
      %s189 = ssub.s32 %s29, %s43
      %s190 = sor.u32 %s188, %s189
      %p191 = scmp.eq.s32.totalorder %s190, 0
      %s193 = sadd.s32 %s192, 1
      %s194 = scalar_select %p191, %s192, %s193
      %p197 = pneg %p191
      %p198 = scmp.eq.s32.totalorder %s21, 3
      %p199 = por %p197, %p198
      %p200 = scmp.ne.s32.totalorder %s192, %s195
      %p201 = scmp.eq.s32.totalorder %s21, 0
      %p202 = por %p200, %p201
      %p203 = scmp.ne.s32.totalorder %s192, %s195
      %p204 = scmp.eq.s32.totalorder %s26, 3
      %p205 = por %p203, %p204
      %p206 = scmp.ne.s32.totalorder %s195, %s196
      %p207 = scmp.eq.s32.totalorder %s26, 0
      %p208 = por %p206, %p207
      %p209 = scmp.ne.s32.totalorder %s195, %s196
      %p210 = scmp.eq.s32.totalorder %s27, 3
      %p211 = por %p209, %p210
      %p213 = scmp.ne.s32.totalorder %s196, %s212
      %p214 = scmp.eq.s32.totalorder %s27, 0
      %p215 = por %p213, %p214
      %p216 = scmp.le.s32.totalorder 1, %s21
      %p217 = scmp.lt.s32.totalorder %s21, 5
      %p218 = pnand %p216, %p217
      %p219 = pneg %p218
      // Predicated region
      $region9: #{tpu_custom_call.1} parent=5 // pred_check
        _
      $region10: #{tpu_custom_call.1} parent=5 // pred_check_branch
        %221 = sbr.rel (%p218) target = $region12
      $region11: #{tpu_custom_call.1} parent=5 // pred_region
        %s222 = ssub.s32 %s21, 1
        // Predicated region
        $region13: #{tpu_custom_call.1} parent=11 // pred_check
          %p223 = pneg %p117
        $region14: #{tpu_custom_call.1} parent=11 // pred_check_branch
          %225 = sbr.rel (%p223) target = $region16
        $region15: #{tpu_custom_call.1} parent=11 // pred_region
          _
        $region16: #{tpu_custom_call.1} parent=11 // pred_fallthru
          _
        // Predicated region
        $region17: #{tpu_custom_call.1} parent=11 // pred_check
          %p226 = pneg %p138
        $region18: #{tpu_custom_call.1} parent=11 // pred_check_branch
          %228 = sbr.rel (%p226) target = $region20
        $region19: #{tpu_custom_call.1} parent=11 // pred_region
          _
        $region20: #{tpu_custom_call.1} parent=11 // pred_fallthru
          _
        // Predicated region
        $region21: #{tpu_custom_call.1} parent=11 // pred_check
          %p229 = pneg %p159
        $region22: #{tpu_custom_call.1} parent=11 // pred_check_branch
          %231 = sbr.rel (%p229) target = $region24
        $region23: #{tpu_custom_call.1} parent=11 // pred_region
          _
        $region24: #{tpu_custom_call.1} parent=11 // pred_fallthru
          _
        // Predicated region
        $region25: #{tpu_custom_call.1} parent=11 // pred_check
          %p232 = pneg %p180
        $region26: #{tpu_custom_call.1} parent=11 // pred_check_branch
          %234 = sbr.rel (%p232) target = $region28
        $region27: #{tpu_custom_call.1} parent=11 // pred_region
          _
        $region28: #{tpu_custom_call.1} parent=11 // pred_fallthru
          _
      $region12: #{tpu_custom_call.1} parent=5 // pred_fallthru
        _
      %p235 = scmp.lt.s32.totalorder %s21, 4
      // Predicated region
      $region29: #{tpu_custom_call.1} parent=5 // pred_check
        %p236 = pneg %p235
      $region30: #{tpu_custom_call.1} parent=5 // pred_check_branch
        %238 = sbr.rel (%p236) target = $region32
      $region31: #{tpu_custom_call.1} parent=5 // pred_region
        // Predicated region
        $region33: #{tpu_custom_call.1} parent=31 // pred_check
          %p239 = pneg %p62
        $region34: #{tpu_custom_call.1} parent=31 // pred_check_branch
          %241 = sbr.rel (%p239) target = $region36
        $region35: #{tpu_custom_call.1} parent=31 // pred_region
          %s242 = sand.u32 %s52, 1
          %s243 = scalar_lea.sflag [#allocation7], %s242
          %s244 = sand.u32 %s52, 1
          %s245 = smul.addr %s244, 128
          %s246 = scalar_lea.vmem [#allocation6], %s245
          %s247 = smul.u32 4, %s29
          %s249 = ssub.s32 2048, 2048
          %250 = vsyncadd %s243, %s249
          %s251 = smul.addr %s28, 16
          %s252 = sadd.s32 %s247, %s251
          %s253 = smul.addr %s252, 128
          %s254 = scalar_lea.hbm %s0, %s253
          %s255 = sshll.u32 %s246, 4
          %s256 = int_to_ptr.vmem [resolvable:$true] %s255
          %261 = dma.hbm_to_vmem [thread:$0]  %s254, 2048, %s256, %s243, 512, 512, 32
        $region36: #{tpu_custom_call.1} parent=31 // pred_fallthru
          _
        // Predicated region
        $region37: #{tpu_custom_call.1} parent=31 // pred_check
          %p262 = pneg %p90
        $region38: #{tpu_custom_call.1} parent=31 // pred_check_branch
          %264 = sbr.rel (%p262) target = $region40
        $region39: #{tpu_custom_call.1} parent=31 // pred_region
          %s265 = sand.u32 %s80, 1
          %s266 = scalar_lea.sflag [#allocation10], %s265
          %s267 = sand.u32 %s80, 1
          %s268 = smul.addr %s267, 32
          %s269 = scalar_lea.vmem [#allocation9], %s268
          %s270 = smul.u32 2, %s30
          %s272 = ssub.s32 512, 512
          %273 = vsyncadd %s266, %s272
          %s274 = smul.addr %s28, 16
          %s275 = sadd.s32 %s270, %s274
          %s276 = smul.addr %s275, 64
          %s277 = scalar_lea.hbm %s1, %s276
          %s278 = sshll.u32 %s269, 4
          %s279 = int_to_ptr.vmem [resolvable:$true] %s278
          %284 = dma.hbm_to_vmem [thread:$0]  %s277, 512, %s279, %s266, 256, 128, 8
        $region40: #{tpu_custom_call.1} parent=31 // pred_fallthru
          _
      $region32: #{tpu_custom_call.1} parent=5 // pred_fallthru
        _
      %p285 = scmp.le.s32.totalorder 1, %s21
      %p286 = scmp.lt.s32.totalorder %s21, 5
      %p287 = pnand %p285, %p286
      %p288 = pneg %p287
      // Predicated region
      $region41: #{tpu_custom_call.1} parent=5 // pred_check
        _
      $region42: #{tpu_custom_call.1} parent=5 // pred_check_branch
        %290 = sbr.rel (%p287) target = $region44
      $region43: #{tpu_custom_call.1} parent=5 // pred_region
        %s291 = ssub.s32 %s21, 1
        %s292 = sand.u32 %s55, 1
        %s293 = scalar_lea.sflag [#allocation7], %s292
        %s294 = sand.u32 %s55, 1
        %s295 = smul.addr %s294, 128
        %s296 = scalar_lea.vmem [#allocation6], %s295
        // Predicated region
        $region45: #{tpu_custom_call.1} parent=43 // pred_check
          %p297 = pneg %p68
        $region46: #{tpu_custom_call.1} parent=43 // pred_check_branch
          %299 = sbr.rel (%p297) target = $region48
        $region47: #{tpu_custom_call.1} parent=43 // pred_region
          %300 = dma.done %s293, 2048
        $region48: #{tpu_custom_call.1} parent=43 // pred_fallthru
          _
        %s301 = sand.u32 %s83, 1
        %s302 = scalar_lea.sflag [#allocation10], %s301
        %s303 = sand.u32 %s83, 1
        %s304 = smul.addr %s303, 32
        %s305 = scalar_lea.vmem [#allocation9], %s304
        // Predicated region
        $region49: #{tpu_custom_call.1} parent=43 // pred_check
          %p306 = pneg %p96
        $region50: #{tpu_custom_call.1} parent=43 // pred_check_branch
          %308 = sbr.rel (%p306) target = $region52
        $region51: #{tpu_custom_call.1} parent=43 // pred_region
          %309 = dma.done %s302, 512
        $region52: #{tpu_custom_call.1} parent=43 // pred_fallthru
          _
        %s310 = sand.u32 %s55, 1
        %s311 = scalar_lea.sflag [#allocation7], %s310
        %s312 = sand.u32 %s55, 1
        %s313 = smul.addr %s312, 128
        %s314 = scalar_lea.vmem [#allocation6], %s313
        %p315 = pneg %p68
        %p316 = pneg %p65
        %s317 = sand.u32 %s83, 1
        %s318 = scalar_lea.sflag [#allocation10], %s317
        %s319 = sand.u32 %s83, 1
        %s320 = smul.addr %s319, 32
        %s321 = scalar_lea.vmem [#allocation9], %s320
        %p322 = pneg %p96
        %p323 = pneg %p93
        %p324 = pneg %p117
        %p325 = pneg %p114
        %p326 = pneg %p138
        %p327 = pneg %p135
        %p328 = pneg %p159
        %p329 = pneg %p156
        %p330 = pneg %p180
        %p331 = pneg %p177
        %p332 = pneg %p208
        %p333 = pneg %p205
        %s334 = sand.u32 %s195, 1
        %s335 = scalar_lea.sflag [#allocation8], %s334
        %s336 = sand.u32 %s195, 1
        %s337 = smul.addr %s336, 128
        %s338 = scalar_lea.vmem [#allocation11], %s337
        %s339 = smul.u32 4, %s32
        %s340 = smul.u32 2, %s33
        %s341 = smul.u32 4, %s32
        %p343 = scmp.eq.s32.totalorder %s33, 0
        // Predicated region
        $region53: #{tpu_custom_call.1} parent=43 // pred_check
          %p344 = pneg %p343
        $region54: #{tpu_custom_call.1} parent=43 // pred_check_branch
          %346 = sbr.rel (%p344) target = $region56
        $region55: #{tpu_custom_call.1} parent=43 // pred_region
          %v347 = vld [vmem:[%s2] sm:$0xff]
          %v348 = vld [vmem:[%s296] sm:$0xff]
          %v349 = vld [vmem:[%s296 + $0x8] sm:$0xff]
          %v350 = vld [vmem:[%s296 + $0x10] sm:$0xff]
          %v351 = vld [vmem:[%s296 + $0x18] sm:$0xff]
          %v352 = vld [vmem:[%s296 + $0x20] sm:$0xff]
          %v353 = vld [vmem:[%s296 + $0x28] sm:$0xff]
          %v354 = vld [vmem:[%s296 + $0x30] sm:$0xff]
          %v355 = vld [vmem:[%s296 + $0x38] sm:$0xff]
          %v356 = vld [vmem:[%s296 + $0x40] sm:$0xff]
          %v357 = vld [vmem:[%s296 + $0x48] sm:$0xff]
          %v358 = vld [vmem:[%s296 + $0x50] sm:$0xff]
          %v359 = vld [vmem:[%s296 + $0x58] sm:$0xff]
          %v360 = vld [vmem:[%s296 + $0x60] sm:$0xff]
          %v361 = vld [vmem:[%s296 + $0x68] sm:$0xff]
          %v362 = vld [vmem:[%s296 + $0x70] sm:$0xff]
          %v363 = vld [vmem:[%s296 + $0x78] sm:$0xff]
          %v364 = vld [vmem:[%s3] sm:$0xff]
          %366 = vset.pattern.permute.xlu0 0
          %367 = vperm.xlu0 %366, %v364
          %v368 = vpop.permute.xlu0 %367
          %vm370 = vcmask 261120
          %v372 = vsel %vm370, %v347, 0
          %374 = vmatprep.subr.mxu0 %v349
          %375 = vmatpush1.msra.mxu0 %v348
          %376 = vmatprep.subr.mxu0 %v353
          %377 = vmatpush1.msra.mxu0 %v352
          %378 = vmatprep.subr.mxu0 %v357
          %379 = vmatpush1.msra.mxu0 %v356
          %380 = vmatprep.subr.mxu0 %v361
          %381 = vmatpush1.msra.mxu0 %v360
          %382 = vmatprep.subr.mxu0 0.0
          %383 = vmatpush1.msra.mxu0 0.0
          %384 = vmatprep.subr.mxu0 0.0
          %385 = vmatpush1.msra.mxu0 0.0
          %386 = vmatprep.subr.mxu0 0.0
          %387 = vmatpush1.msra.mxu0 0.0
          %388 = vmatprep.subr.mxu0 0.0
          %389 = vmatpush1.msra.mxu0 0.0
          %390 = vmatprep.subr.mxu0 0.0
          %391 = vmatpush1.msra.mxu0 0.0
          %392 = vmatprep.subr.mxu0 0.0
          %393 = vmatpush1.msra.mxu0 0.0
          %394 = vmatprep.subr.mxu0 0.0
          %395 = vmatpush1.msra.mxu0 0.0
          %396 = vmatprep.subr.mxu0 0.0
          %397 = vmatpush1.msra.mxu0 0.0
          %398 = vmatprep.subr.mxu0 0.0
          %399 = vmatpush1.msra.mxu0 0.0
          %400 = vmatprep.subr.mxu0 0.0
          %401 = vmatpush1.msra.mxu0 0.0
          %402 = vmatprep.subr.mxu0 0.0
          %403 = vmatpush1.msra.mxu0 0.0
          %404 = vmatprep.subr.mxu0 0.0
          %405 = vmatpush1.msra.mxu0 0.0
          %406 = vmatprep.subr.mxu0 0.0
          %407 = vmatpush1.msra.mxu0 0.0
          %408 = vmatprep.subr.mxu0 0.0
          %409 = vmatpush1.msra.mxu0 0.0
          %410 = vmatprep.subr.mxu0 0.0
          %411 = vmatpush1.msra.mxu0 0.0
          %412 = vmatprep.subr.mxu0 0.0
          %413 = vmatpush1.msra.mxu0 0.0
          %414 = vmatprep.subr.mxu0 0.0
          %415 = vmatpush1.msra.mxu0 0.0
          %416 = vmatprep.subr.mxu0 0.0
          %417 = vmatpush1.msra.mxu0 0.0
          %418 = vmatprep.subr.mxu0 0.0
          %419 = vmatpush1.msra.mxu0 0.0
          %420 = vmatprep.subr.mxu0 0.0
          %421 = vmatpush1.msra.mxu0 0.0
          %422 = vmatprep.subr.mxu0 0.0
          %423 = vmatpush1.msra.mxu0 0.0
          %424 = vmatprep.subr.mxu0 0.0
          %425 = vmatpush1.msra.mxu0 0.0
          %426 = vmatprep.subr.mxu0 0.0
          %427 = vmatpush1.msra.mxu0 0.0
          %428 = vmatprep.subr.mxu0 0.0
          %429 = vmatpush1.msra.mxu0 0.0
          %430 = vmatprep.subr.mxu0 0.0
          %431 = vmatpush1.msra.mxu0 0.0
          %432 = vmatprep.subr.mxu0 0.0
          %433 = vmatpush1.msra.mxu0 0.0
          %434 = vmatprep.subr.mxu0 0.0
          %435 = vmatpush1.msra.mxu0 0.0
          %436 = vmatprep.subr.mxu0 0.0
          %437 = vmatpush1.msra.mxu0 0.0
          %438 = vmatprep.mubr.f32.mxu0 0.0
          %439 = vmatmul.mubr.f32.gmra.mrb[0].mxu0 %v372
          %v440 = vpop.f32.mrb[0].mxu0
          %v441 = vadd.f32 %v368, %v440
          %v442 = vpop.f32.mrb[0].mxu0
          %v443 = vadd.f32 %v368, %v442
          %444 = vdwg.mxu0
          %445 = vmatprep.subr.mxu0 %v351
          %446 = vmatpush1.msra.mxu0 %v350
          %447 = vmatprep.subr.mxu0 %v355
          %448 = vmatpush1.msra.mxu0 %v354
          %449 = vmatprep.subr.mxu0 %v359
          %450 = vmatpush1.msra.mxu0 %v358
          %451 = vmatprep.subr.mxu0 %v363
          %452 = vmatpush1.msra.mxu0 %v362
          %453 = vmatprep.subr.mxu0 0.0
          %454 = vmatpush1.msra.mxu0 0.0
          %455 = vmatprep.subr.mxu0 0.0
          %456 = vmatpush1.msra.mxu0 0.0
          %457 = vmatprep.subr.mxu0 0.0
          %458 = vmatpush1.msra.mxu0 0.0
          %459 = vmatprep.subr.mxu0 0.0
          %460 = vmatpush1.msra.mxu0 0.0
          %461 = vmatprep.subr.mxu0 0.0
          %462 = vmatpush1.msra.mxu0 0.0
          %463 = vmatprep.subr.mxu0 0.0
          %464 = vmatpush1.msra.mxu0 0.0
          %465 = vmatprep.subr.mxu0 0.0
          %466 = vmatpush1.msra.mxu0 0.0
          %467 = vmatprep.subr.mxu0 0.0
          %468 = vmatpush1.msra.mxu0 0.0
          %469 = vmatprep.subr.mxu0 0.0
          %470 = vmatpush1.msra.mxu0 0.0
          %471 = vmatprep.subr.mxu0 0.0
          %472 = vmatpush1.msra.mxu0 0.0
          %473 = vmatprep.subr.mxu0 0.0
          %474 = vmatpush1.msra.mxu0 0.0
          %475 = vmatprep.subr.mxu0 0.0
          %476 = vmatpush1.msra.mxu0 0.0
          %477 = vmatprep.subr.mxu0 0.0
          %478 = vmatpush1.msra.mxu0 0.0
          %479 = vmatprep.subr.mxu0 0.0
          %480 = vmatpush1.msra.mxu0 0.0
          %481 = vmatprep.subr.mxu0 0.0
          %482 = vmatpush1.msra.mxu0 0.0
          %483 = vmatprep.subr.mxu0 0.0
          %484 = vmatpush1.msra.mxu0 0.0
          %485 = vmatprep.subr.mxu0 0.0
          %486 = vmatpush1.msra.mxu0 0.0
          %487 = vmatprep.subr.mxu0 0.0
          %488 = vmatpush1.msra.mxu0 0.0
          %489 = vmatprep.subr.mxu0 0.0
          %490 = vmatpush1.msra.mxu0 0.0
          %491 = vmatprep.subr.mxu0 0.0
          %492 = vmatpush1.msra.mxu0 0.0
          %493 = vmatprep.subr.mxu0 0.0
          %494 = vmatpush1.msra.mxu0 0.0
          %495 = vmatprep.subr.mxu0 0.0
          %496 = vmatpush1.msra.mxu0 0.0
          %497 = vmatprep.subr.mxu0 0.0
          %498 = vmatpush1.msra.mxu0 0.0
          %499 = vmatprep.subr.mxu0 0.0
          %500 = vmatpush1.msra.mxu0 0.0
          %501 = vmatprep.subr.mxu0 0.0
          %502 = vmatpush1.msra.mxu0 0.0
          %503 = vmatprep.subr.mxu0 0.0
          %504 = vmatpush1.msra.mxu0 0.0
          %505 = vmatprep.subr.mxu0 0.0
          %506 = vmatpush1.msra.mxu0 0.0
          %507 = vmatprep.subr.mxu0 0.0
          %508 = vmatpush1.msra.mxu0 0.0
          %509 = vmatprep.mubr.f32.mxu0 0.0
          %510 = vmatmul.mubr.f32.gmra.mrb[0].mxu0 %v372
          %v511 = vpop.f32.mrb[0].mxu0
          %v512 = vadd.f32 %v368, %v511
          %v513 = vpop.f32.mrb[0].mxu0
          %v514 = vadd.f32 %v368, %v513
          %515 = vdwg.mxu0
          %v516 = vpack.c.bf16 %v441, %v441
          %v517 = vpack.c.bf16 %v443, %v443
          %v518 = vpack.c.bf16 %v512, %v512
          %v519 = vpack.c.bf16 %v514, %v514
          %v524 = vunpack.c.l.b16 %v516
          %v525 = vunpack.c.l.b16 %v517
          %v526 = vunpack.c.l.b16 %v518
          %v527 = vunpack.c.l.b16 %v519
          %v528 = vpack.c.b16 %v525, %v524
          %v529 = vpack.c.b16 %v527, %v526
          %532 = vst [vmem:[#allocation2] sm:$0xff] %v528
          %533 = vst [vmem:[#allocation2 + $0x8] sm:$0xff] %v529
          %v534 = vlaneseq
          %vm535 = vcmp.ge.s32.totalorder %v534, 0
          %vm536 = vcmp.lt.s32.totalorder %v534, 512
          %vm537 = vmand %vm535, %vm536
          %538 = vst.msk [vmem:[#allocation3] sm:$0xf] %vm537, -1e+30
          %539 = vst.msk [vmem:[#allocation4] sm:$0xf] %vm537, 0.0
          %540 = vst [vmem:[#allocation5] sm:$0xff] 0.0
          %541 = vst [vmem:[#allocation5 + $0x8] sm:$0xff] 0.0
          %542 = vst [vmem:[#allocation5 + $0x10] sm:$0xff] 0.0
          %543 = vst [vmem:[#allocation5 + $0x18] sm:$0xff] 0.0
          %544 = vst [vmem:[#allocation5 + $0x20] sm:$0xff] 0.0
          %545 = vst [vmem:[#allocation5 + $0x28] sm:$0xff] 0.0
          %546 = vst [vmem:[#allocation5 + $0x30] sm:$0xff] 0.0
          %547 = vst [vmem:[#allocation5 + $0x38] sm:$0xff] 0.0
          %548 = vst [vmem:[#allocation5 + $0x40] sm:$0xff] 0.0
          %549 = vst [vmem:[#allocation5 + $0x48] sm:$0xff] 0.0
          %550 = vst [vmem:[#allocation5 + $0x50] sm:$0xff] 0.0
          %551 = vst [vmem:[#allocation5 + $0x58] sm:$0xff] 0.0
          %552 = vst [vmem:[#allocation5 + $0x60] sm:$0xff] 0.0
          %553 = vst [vmem:[#allocation5 + $0x68] sm:$0xff] 0.0
          %554 = vst [vmem:[#allocation5 + $0x70] sm:$0xff] 0.0
          %555 = vst [vmem:[#allocation5 + $0x78] sm:$0xff] 0.0
        $region56: #{tpu_custom_call.1} parent=43 // pred_fallthru
          _
        %v556 = vld [vmem:[%s4] sm:$0xf]
        %v557 = vld [vmem:[%s4 + $0x4] sm:$0xf]
        %v558 = vld [vmem:[%s4 + $0x8] sm:$0xf]
        %v559 = vld [vmem:[%s4 + $0xc] sm:$0xf]
        %v560 = vld [vmem:[%s4 + $0x10] sm:$0xf]
        %v561 = vld [vmem:[%s305] sm:$0xff]
        %v562 = vld [vmem:[%s305 + $0x8] sm:$0xff]
        %v563 = vld [vmem:[%s305 + $0x10] sm:$0xff]
        %v564 = vld [vmem:[%s305 + $0x18] sm:$0xff]
        %v570 = vunpack.c.l.b16 %v556
        %v571 = vunpack.c.l.b16 %v557
        %v572 = vunpack.c.l.b16 %v558
        %v573 = vunpack.c.l.b16 %v559
        %v574 = vunpack.c.l.b16 %v560
        %v575 = vpack.c.b16 %v571, %v570
        %v576 = vpack.c.b16 %v573, %v572
        %v577 = vpack.c.b16 %v574, %v574
        %v582 = vunpack.c.l.b16 %v561
        %v583 = vunpack.c.h.b16 %v561
        %v584 = vunpack.c.l.b16 %v562
        %v585 = vunpack.c.h.b16 %v562
        %v586 = vunpack.c.l.b16 %v563
        %v587 = vunpack.c.h.b16 %v563
        %v588 = vunpack.c.l.b16 %v564
        %v589 = vunpack.c.h.b16 %v564
        %v590 = vpack.c.b16 %v584, %v582
        %v591 = vpack.c.b16 %v585, %v583
        %v592 = vpack.c.b16 %v588, %v586
        %v593 = vpack.c.b16 %v589, %v587
        %vm598 = vcmask 261120
        %v600 = vsel %vm598, %v575, 0
        %v603 = vsel %vm598, %v576, 0
        %v606 = vsel %vm598, %v577, 0
        %608 = vmatprep.subr.bf16.mxu0 %v591
        %609 = vmatpush1.bf16.msra.mxu0 %v590
        %610 = vmatprep.subr.bf16.mxu0 %v593
        %611 = vmatpush1.bf16.msra.mxu0 %v592
        %612 = vmatprep.subr.bf16.mxu0 0
        %613 = vmatpush1.bf16.msra.mxu0 0
        %614 = vmatprep.subr.bf16.mxu0 0
        %615 = vmatpush1.bf16.msra.mxu0 0
        %616 = vmatprep.subr.bf16.mxu0 0
        %617 = vmatpush1.bf16.msra.mxu0 0
        %618 = vmatprep.subr.bf16.mxu0 0
        %619 = vmatpush1.bf16.msra.mxu0 0
        %620 = vmatprep.subr.bf16.mxu0 0
        %621 = vmatpush1.bf16.msra.mxu0 0
        %622 = vmatprep.subr.bf16.mxu0 0
        %623 = vmatpush1.bf16.msra.mxu0 0
        %624 = vmatprep.subr.bf16.mxu0 0
        %625 = vmatpush1.bf16.msra.mxu0 0
        %626 = vmatprep.subr.bf16.mxu0 0
        %627 = vmatpush1.bf16.msra.mxu0 0
        %628 = vmatprep.subr.bf16.mxu0 0
        %629 = vmatpush1.bf16.msra.mxu0 0
        %630 = vmatprep.subr.bf16.mxu0 0
        %631 = vmatpush1.bf16.msra.mxu0 0
        %632 = vmatprep.subr.bf16.mxu0 0
        %633 = vmatpush1.bf16.msra.mxu0 0
        %634 = vmatprep.subr.bf16.mxu0 0
        %635 = vmatpush1.bf16.msra.mxu0 0
        %636 = vmatprep.subr.bf16.mxu0 0
        %637 = vmatpush1.bf16.msra.mxu0 0
        %638 = vmatprep.subr.bf16.mxu0 0
        %639 = vmatpush1.bf16.msra.mxu0 0
        %640 = vmatprep.mubr.bf16.mxu0 0
        %641 = vmatmul.mubr.bf16.gmra.mrb[0].mxu0 %v600
        %v642 = vpop.f32.mrb[0].mxu0
        %v643 = vadd.f32 0.0, %v642
        %v644 = vpop.f32.mrb[0].mxu0
        %v645 = vadd.f32 0.0, %v644
        %v646 = vpop.f32.mrb[0].mxu0
        %v647 = vadd.f32 0.0, %v646
        %v648 = vpop.f32.mrb[0].mxu0
        %v649 = vadd.f32 0.0, %v648
        %650 = vmatprep.mubr.bf16.mxu0 0
        %651 = vmatmul.mubr.bf16.gmra.mrb[0].mxu0 %v603
        %v652 = vpop.f32.mrb[0].mxu0
        %v653 = vadd.f32 0.0, %v652
        %v654 = vpop.f32.mrb[0].mxu0
        %v655 = vadd.f32 0.0, %v654
        %v656 = vpop.f32.mrb[0].mxu0
        %v657 = vadd.f32 0.0, %v656
        %v658 = vpop.f32.mrb[0].mxu0
        %v659 = vadd.f32 0.0, %v658
        %660 = vmatprep.mubr.bf16.mxu0 0
        %661 = vmatmul.mubr.bf16.gmra.mrb[0].mxu0 %v606
        %v662 = vpop.f32.mrb[0].mxu0
        %v663 = vadd.f32 0.0, %v662
        %v664 = vpop.f32.mrb[0].mxu0
        %v665 = vadd.f32 0.0, %v664
        %v666 = vpop.f32.mrb[0].mxu0
        %v667 = vpop.f32.mrb[0].mxu0
        %668 = vdwg.mxu0
        %v669 = vpack.c.bf16 %v653, %v647
        %v670 = vpack.c.bf16 %v655, %v649
        %v671 = vpack.c.bf16 %v663, %v657
        %v672 = vpack.c.bf16 %v665, %v659
        %673 = vxpose.xlu0.b32.start [1/16] %v643, 128
        %674 = vxpose.xlu0.b32.cont [2/16] 0.0, 128
        %675 = vxpose.xlu0.b32.cont [3/16] 0.0, 128
        %676 = vxpose.xlu0.b32.cont [4/16] 0.0, 128
        %677 = vxpose.xlu0.b32.cont [5/16] 0.0, 128
        %678 = vxpose.xlu0.b32.cont [6/16] 0.0, 128
        %679 = vxpose.xlu0.b32.cont [7/16] 0.0, 128
        %680 = vxpose.xlu0.b32.cont [8/16] 0.0, 128
        %681 = vxpose.xlu0.b32.cont [9/16] 0.0, 128
        %682 = vxpose.xlu0.b32.cont [10/16] 0.0, 128
        %683 = vxpose.xlu0.b32.cont [11/16] 0.0, 128
        %684 = vxpose.xlu0.b32.cont [12/16] 0.0, 128
        %685 = vxpose.xlu0.b32.cont [13/16] 0.0, 128
        %686 = vxpose.xlu0.b32.cont [14/16] 0.0, 128
        %687 = vxpose.xlu0.b32.cont [15/16] 0.0, 128
        %688 = vxpose.xlu0.b32.end [16/16] 0.0, 128
        %v689 = vpop.trf.xlu0
        %v690 = vpop.trf.xlu0
        %v691 = vpop.trf.xlu0
        %v692 = vpop.trf.xlu0
        %v693 = vpop.trf.xlu0
        %v694 = vpop.trf.xlu0
        %v695 = vpop.trf.xlu0
        %v696 = vpop.trf.xlu0
        %v697 = vpop.trf.xlu0
        %v698 = vpop.trf.xlu0
        %v699 = vpop.trf.xlu0
        %v700 = vpop.trf.xlu0
        %v701 = vpop.trf.xlu0
        %v702 = vpop.trf.xlu0
        %v703 = vpop.trf.xlu0
        %v704 = vpop.trf.xlu0
        %705 = vxpose.xlu0.b32.start [1/16] %v645, 128
        %706 = vxpose.xlu0.b32.cont [2/16] 0.0, 128
        %707 = vxpose.xlu0.b32.cont [3/16] 0.0, 128
        %708 = vxpose.xlu0.b32.cont [4/16] 0.0, 128
        %709 = vxpose.xlu0.b32.cont [5/16] 0.0, 128
        %710 = vxpose.xlu0.b32.cont [6/16] 0.0, 128
        %711 = vxpose.xlu0.b32.cont [7/16] 0.0, 128
        %712 = vxpose.xlu0.b32.cont [8/16] 0.0, 128
        %713 = vxpose.xlu0.b32.cont [9/16] 0.0, 128
        %714 = vxpose.xlu0.b32.cont [10/16] 0.0, 128
        %715 = vxpose.xlu0.b32.cont [11/16] 0.0, 128
        %716 = vxpose.xlu0.b32.cont [12/16] 0.0, 128
        %717 = vxpose.xlu0.b32.cont [13/16] 0.0, 128
        %718 = vxpose.xlu0.b32.cont [14/16] 0.0, 128
        %719 = vxpose.xlu0.b32.cont [15/16] 0.0, 128
        %720 = vxpose.xlu0.b32.end [16/16] 0.0, 128
        %v721 = vpop.trf.xlu0
        %v722 = vpop.trf.xlu0
        %v723 = vpop.trf.xlu0
        %v724 = vpop.trf.xlu0
        %v725 = vpop.trf.xlu0
        %v726 = vpop.trf.xlu0
        %v727 = vpop.trf.xlu0
        %v728 = vpop.trf.xlu0
        %v729 = vpop.trf.xlu0
        %v730 = vpop.trf.xlu0
        %v731 = vpop.trf.xlu0
        %v732 = vpop.trf.xlu0
        %v733 = vpop.trf.xlu0
        %v734 = vpop.trf.xlu0
        %v735 = vpop.trf.xlu0
        %v736 = vpop.trf.xlu0
        %v737 = vpack.c.bf16 %v690, %v689
        %v738 = vpack.c.bf16 %v692, %v691
        %v739 = vpack.c.bf16 %v694, %v693
        %v740 = vpack.c.bf16 %v696, %v695
        %v741 = vpack.c.bf16 %v698, %v697
        %v742 = vpack.c.bf16 %v700, %v699
        %v743 = vpack.c.bf16 %v702, %v701
        %v744 = vpack.c.bf16 %v704, %v703
        %v745 = vpack.c.bf16 %v722, %v721
        %v746 = vpack.c.bf16 %v724, %v723
        %v747 = vpack.c.bf16 %v726, %v725
        %v748 = vpack.c.bf16 %v728, %v727
        %v749 = vpack.c.bf16 %v730, %v729
        %v750 = vpack.c.bf16 %v732, %v731
        %v751 = vpack.c.bf16 %v734, %v733
        %v752 = vpack.c.bf16 %v736, %v735
        %v753 = vld [vmem:[#allocation2] sm:$0xff]
        %v754 = vld [vmem:[#allocation2 + $0x8] sm:$0xff]
        %v757 = vunpack.c.l.b16 %v753
        %v758 = vunpack.c.h.b16 %v753
        %v759 = vunpack.c.l.b16 %v754
        %v760 = vunpack.c.h.b16 %v754
        %v761 = vpack.c.b16 %v757, %v757
        %v762 = vpack.c.b16 %v758, %v758
        %v763 = vpack.c.b16 %v759, %v759
        %v764 = vpack.c.b16 %v760, %v760
        %vm765 = vcmask 64512
        %v767 = vsel %vm765, %v737, 0
        %v770 = vsel %vm765, %v738, 0
        %v773 = vsel %vm765, %v739, 0
        %v776 = vsel %vm765, %v740, 0
        %v779 = vsel %vm765, %v741, 0
        %v782 = vsel %vm765, %v742, 0
        %v785 = vsel %vm765, %v743, 0
        %v788 = vsel %vm765, %v744, 0
        %v791 = vsel %vm765, %v745, 0
        %v794 = vsel %vm765, %v746, 0
        %v797 = vsel %vm765, %v747, 0
        %v800 = vsel %vm765, %v748, 0
        %v803 = vsel %vm765, %v749, 0
        %v806 = vsel %vm765, %v750, 0
        %v809 = vsel %vm765, %v751, 0
        %v812 = vsel %vm765, %v752, 0
        %vm814 = vcmask 1043456
        %v816 = vsel %vm814, %v761, 0
        %v819 = vsel %vm814, %v762, 0
        %v822 = vsel %vm814, %v763, 0
        %v825 = vsel %vm814, %v764, 0
        %827 = vmatprep.subr.bf16.mxu0 %v819
        %828 = vmatpush1.bf16.msra.mxu0 %v816
        %829 = vmatprep.subr.bf16.mxu0 0
        %830 = vmatpush1.bf16.msra.mxu0 0
        %831 = vmatprep.subr.bf16.mxu0 0
        %832 = vmatpush1.bf16.msra.mxu0 0
        %833 = vmatprep.subr.bf16.mxu0 0
        %834 = vmatpush1.bf16.msra.mxu0 0
        %835 = vmatprep.subr.bf16.mxu0 0
        %836 = vmatpush1.bf16.msra.mxu0 0
        %837 = vmatprep.subr.bf16.mxu0 0
        %838 = vmatpush1.bf16.msra.mxu0 0
        %839 = vmatprep.subr.bf16.mxu0 0
        %840 = vmatpush1.bf16.msra.mxu0 0
        %841 = vmatprep.subr.bf16.mxu0 0
        %842 = vmatpush1.bf16.msra.mxu0 0
        %843 = vmatprep.subr.bf16.mxu0 0
        %844 = vmatpush1.bf16.msra.mxu0 0
        %845 = vmatprep.subr.bf16.mxu0 0
        %846 = vmatpush1.bf16.msra.mxu0 0
        %847 = vmatprep.subr.bf16.mxu0 0
        %848 = vmatpush1.bf16.msra.mxu0 0
        %849 = vmatprep.subr.bf16.mxu0 0
        %850 = vmatpush1.bf16.msra.mxu0 0
        %851 = vmatprep.subr.bf16.mxu0 0
        %852 = vmatpush1.bf16.msra.mxu0 0
        %853 = vmatprep.subr.bf16.mxu0 0
        %854 = vmatpush1.bf16.msra.mxu0 0
        %855 = vmatprep.subr.bf16.mxu0 0
        %856 = vmatpush1.bf16.msra.mxu0 0
        %857 = vmatprep.subr.bf16.mxu0 0
        %858 = vmatpush1.bf16.msra.mxu0 0
        %859 = vmatprep.mubr.bf16.mxu0 0
        %860 = vmatmul.mubr.bf16.gmra.mrb[0].mxu0 %v767
        %v861 = vpop.f32.mrb[0].mxu0
        %v862 = vadd.f32 0.0, %v861
        %v863 = vpop.f32.mrb[0].mxu0
        %v864 = vadd.f32 0.0, %v863
        %v865 = vpop.f32.mrb[0].mxu0
        %v866 = vadd.f32 0.0, %v865
        %v867 = vpop.f32.mrb[0].mxu0
        %v868 = vadd.f32 0.0, %v867
        %869 = vmatprep.mubr.bf16.mxu0 0
        %870 = vmatmul.mubr.bf16.gmra.mrb[0].mxu0 %v770
        %v871 = vpop.f32.mrb[0].mxu0
        %v872 = vadd.f32 0.0, %v871
        %v873 = vpop.f32.mrb[0].mxu0
        %v874 = vadd.f32 0.0, %v873
        %v875 = vpop.f32.mrb[0].mxu0
        %v876 = vadd.f32 0.0, %v875
        %v877 = vpop.f32.mrb[0].mxu0
        %v878 = vadd.f32 0.0, %v877
        %879 = vmatprep.mubr.bf16.mxu0 0
        %880 = vmatmul.mubr.bf16.gmra.mrb[0].mxu0 %v773
        %v881 = vpop.f32.mrb[0].mxu0
        %v882 = vadd.f32 0.0, %v881
        %v883 = vpop.f32.mrb[0].mxu0
        %v884 = vadd.f32 0.0, %v883
        %v885 = vpop.f32.mrb[0].mxu0
        %v886 = vadd.f32 0.0, %v885
        %v887 = vpop.f32.mrb[0].mxu0
        %v888 = vadd.f32 0.0, %v887
        %889 = vmatprep.mubr.bf16.mxu0 0
        %890 = vmatmul.mubr.bf16.gmra.mrb[0].mxu0 %v776
        %v891 = vpop.f32.mrb[0].mxu0
        %v892 = vadd.f32 0.0, %v891
        %v893 = vpop.f32.mrb[0].mxu0
        %v894 = vadd.f32 0.0, %v893
        %v895 = vpop.f32.mrb[0].mxu0
        %v896 = vadd.f32 0.0, %v895
        %v897 = vpop.f32.mrb[0].mxu0
        %v898 = vadd.f32 0.0, %v897
        %899 = vmatprep.mubr.bf16.mxu0 0
        %900 = vmatmul.mubr.bf16.gmra.mrb[0].mxu0 %v779
        %v901 = vpop.f32.mrb[0].mxu0
        %v902 = vadd.f32 0.0, %v901
        %v903 = vpop.f32.mrb[0].mxu0
        %v904 = vadd.f32 0.0, %v903
        %v905 = vpop.f32.mrb[0].mxu0
        %v906 = vadd.f32 0.0, %v905
        %v907 = vpop.f32.mrb[0].mxu0
        %v908 = vadd.f32 0.0, %v907
        %909 = vmatprep.mubr.bf16.mxu0 0
        %910 = vmatmul.mubr.bf16.gmra.mrb[0].mxu0 %v782
        %v911 = vpop.f32.mrb[0].mxu0
        %v912 = vadd.f32 0.0, %v911
        %v913 = vpop.f32.mrb[0].mxu0
        %v914 = vadd.f32 0.0, %v913
        %v915 = vpop.f32.mrb[0].mxu0
        %v916 = vadd.f32 0.0, %v915
        %v917 = vpop.f32.mrb[0].mxu0
        %v918 = vadd.f32 0.0, %v917
        %919 = vmatprep.mubr.bf16.mxu0 0
        %920 = vmatmul.mubr.bf16.gmra.mrb[0].mxu0 %v785
        %v921 = vpop.f32.mrb[0].mxu0
        %v922 = vadd.f32 0.0, %v921
        %v923 = vpop.f32.mrb[0].mxu0
        %v924 = vadd.f32 0.0, %v923
        %v925 = vpop.f32.mrb[0].mxu0
        %v926 = vadd.f32 0.0, %v925
        %v927 = vpop.f32.mrb[0].mxu0
        %v928 = vadd.f32 0.0, %v927
        %929 = vmatprep.mubr.bf16.mxu0 0
        %930 = vmatmul.mubr.bf16.gmra.mrb[0].mxu0 %v788
        %v931 = vpop.f32.mrb[0].mxu0
        %v932 = vadd.f32 0.0, %v931
        %v933 = vpop.f32.mrb[0].mxu0
        %v934 = vadd.f32 0.0, %v933
        %v935 = vpop.f32.mrb[0].mxu0
        %v936 = vadd.f32 0.0, %v935
        %v937 = vpop.f32.mrb[0].mxu0
        %v938 = vadd.f32 0.0, %v937
        %939 = vmatprep.mubr.bf16.mxu0 0
        %940 = vmatmul.mubr.bf16.gmra.mrb[0].mxu0 %v791
        %v941 = vpop.f32.mrb[0].mxu0
        %v942 = vadd.f32 0.0, %v941
        %v943 = vpop.f32.mrb[0].mxu0
        %v944 = vadd.f32 0.0, %v943
        %v945 = vpop.f32.mrb[0].mxu0
        %v946 = vadd.f32 0.0, %v945
        %v947 = vpop.f32.mrb[0].mxu0
        %v948 = vadd.f32 0.0, %v947
        %949 = vmatprep.mubr.bf16.mxu0 0
        %950 = vmatmul.mubr.bf16.gmra.mrb[0].mxu0 %v794
        %v951 = vpop.f32.mrb[0].mxu0
        %v952 = vadd.f32 0.0, %v951
        %v953 = vpop.f32.mrb[0].mxu0
        %v954 = vadd.f32 0.0, %v953
        %v955 = vpop.f32.mrb[0].mxu0
        %v956 = vadd.f32 0.0, %v955
        %v957 = vpop.f32.mrb[0].mxu0
        %v958 = vadd.f32 0.0, %v957
        %959 = vmatprep.mubr.bf16.mxu0 0
        %960 = vmatmul.mubr.bf16.gmra.mrb[0].mxu0 %v797
        %v961 = vpop.f32.mrb[0].mxu0
        %v962 = vadd.f32 0.0, %v961
        %v963 = vpop.f32.mrb[0].mxu0
        %v964 = vadd.f32 0.0, %v963
        %v965 = vpop.f32.mrb[0].mxu0
        %v966 = vadd.f32 0.0, %v965
        %v967 = vpop.f32.mrb[0].mxu0
        %v968 = vadd.f32 0.0, %v967
        %969 = vmatprep.mubr.bf16.mxu0 0
        %970 = vmatmul.mubr.bf16.gmra.mrb[0].mxu0 %v800
        %v971 = vpop.f32.mrb[0].mxu0
        %v972 = vadd.f32 0.0, %v971
        %v973 = vpop.f32.mrb[0].mxu0
        %v974 = vadd.f32 0.0, %v973
        %v975 = vpop.f32.mrb[0].mxu0
        %v976 = vadd.f32 0.0, %v975
        %v977 = vpop.f32.mrb[0].mxu0
        %v978 = vadd.f32 0.0, %v977
        %979 = vmatprep.mubr.bf16.mxu0 0
        %980 = vmatmul.mubr.bf16.gmra.mrb[0].mxu0 %v803
        %v981 = vpop.f32.mrb[0].mxu0
        %v982 = vadd.f32 0.0, %v981
        %v983 = vpop.f32.mrb[0].mxu0
        %v984 = vadd.f32 0.0, %v983
        %v985 = vpop.f32.mrb[0].mxu0
        %v986 = vadd.f32 0.0, %v985
        %v987 = vpop.f32.mrb[0].mxu0
        %v988 = vadd.f32 0.0, %v987
        %989 = vmatprep.mubr.bf16.mxu0 0
        %990 = vmatmul.mubr.bf16.gmra.mrb[0].mxu0 %v806
        %v991 = vpop.f32.mrb[0].mxu0
        %v992 = vadd.f32 0.0, %v991
        %v993 = vpop.f32.mrb[0].mxu0
        %v994 = vadd.f32 0.0, %v993
        %v995 = vpop.f32.mrb[0].mxu0
        %v996 = vadd.f32 0.0, %v995
        %v997 = vpop.f32.mrb[0].mxu0
        %v998 = vadd.f32 0.0, %v997
        %999 = vmatprep.mubr.bf16.mxu0 0
        %1000 = vmatmul.mubr.bf16.gmra.mrb[0].mxu0 %v809
        %v1001 = vpop.f32.mrb[0].mxu0
        %v1002 = vadd.f32 0.0, %v1001
        %v1003 = vpop.f32.mrb[0].mxu0
        %v1004 = vadd.f32 0.0, %v1003
        %v1005 = vpop.f32.mrb[0].mxu0
        %v1006 = vadd.f32 0.0, %v1005
        %v1007 = vpop.f32.mrb[0].mxu0
        %v1008 = vadd.f32 0.0, %v1007
        %1009 = vmatprep.mubr.bf16.mxu0 0
        %1010 = vmatmul.mubr.bf16.gmra.mrb[0].mxu0 %v812
        %v1011 = vpop.f32.mrb[0].mxu0
        %v1012 = vadd.f32 0.0, %v1011
        %v1013 = vpop.f32.mrb[0].mxu0
        %v1014 = vadd.f32 0.0, %v1013
        %v1015 = vpop.f32.mrb[0].mxu0
        %v1016 = vadd.f32 0.0, %v1015
        %v1017 = vpop.f32.mrb[0].mxu0
        %v1018 = vadd.f32 0.0, %v1017
        %1019 = vdwg.mxu0
        %1020 = vmatprep.subr.bf16.mxu0 %v825
        %1021 = vmatpush1.bf16.msra.mxu0 %v822
        %1022 = vmatprep.subr.bf16.mxu0 0
        %1023 = vmatpush1.bf16.msra.mxu0 0
        %1024 = vmatprep.subr.bf16.mxu0 0
        %1025 = vmatpush1.bf16.msra.mxu0 0
        %1026 = vmatprep.subr.bf16.mxu0 0
        %1027 = vmatpush1.bf16.msra.mxu0 0
        %1028 = vmatprep.subr.bf16.mxu0 0
        %1029 = vmatpush1.bf16.msra.mxu0 0
        %1030 = vmatprep.subr.bf16.mxu0 0
        %1031 = vmatpush1.bf16.msra.mxu0 0
        %1032 = vmatprep.subr.bf16.mxu0 0
        %1033 = vmatpush1.bf16.msra.mxu0 0
        %1034 = vmatprep.subr.bf16.mxu0 0
        %1035 = vmatpush1.bf16.msra.mxu0 0
        %1036 = vmatprep.subr.bf16.mxu0 0
        %1037 = vmatpush1.bf16.msra.mxu0 0
        %1038 = vmatprep.subr.bf16.mxu0 0
        %1039 = vmatpush1.bf16.msra.mxu0 0
        %1040 = vmatprep.subr.bf16.mxu0 0
        %1041 = vmatpush1.bf16.msra.mxu0 0
        %1042 = vmatprep.subr.bf16.mxu0 0
        %1043 = vmatpush1.bf16.msra.mxu0 0
        %1044 = vmatprep.subr.bf16.mxu0 0
        %1045 = vmatpush1.bf16.msra.mxu0 0
        %1046 = vmatprep.subr.bf16.mxu0 0
        %1047 = vmatpush1.bf16.msra.mxu0 0
        %1048 = vmatprep.subr.bf16.mxu0 0
        %1049 = vmatpush1.bf16.msra.mxu0 0
        %1050 = vmatprep.subr.bf16.mxu0 0
        %1051 = vmatpush1.bf16.msra.mxu0 0
        %1052 = vmatprep.mubr.bf16.mxu0 0
        %1053 = vmatmul.mubr.bf16.gmra.mrb[0].mxu0 %v767
        %v1054 = vpop.f32.mrb[0].mxu0
        %v1055 = vadd.f32 0.0, %v1054
        %v1056 = vpop.f32.mrb[0].mxu0
        %v1057 = vadd.f32 0.0, %v1056
        %v1058 = vpop.f32.mrb[0].mxu0
        %v1059 = vadd.f32 0.0, %v1058
        %v1060 = vpop.f32.mrb[0].mxu0
        %v1061 = vadd.f32 0.0, %v1060
        %1062 = vmatprep.mubr.bf16.mxu0 0
        %1063 = vmatmul.mubr.bf16.gmra.mrb[0].mxu0 %v770
        %v1064 = vpop.f32.mrb[0].mxu0
        %v1065 = vadd.f32 0.0, %v1064
        %v1066 = vpop.f32.mrb[0].mxu0
        %v1067 = vadd.f32 0.0, %v1066
        %v1068 = vpop.f32.mrb[0].mxu0
        %v1069 = vadd.f32 0.0, %v1068
        %v1070 = vpop.f32.mrb[0].mxu0
        %v1071 = vadd.f32 0.0, %v1070
        %1072 = vmatprep.mubr.bf16.mxu0 0
        %1073 = vmatmul.mubr.bf16.gmra.mrb[0].mxu0 %v773
        %v1074 = vpop.f32.mrb[0].mxu0
        %v1075 = vadd.f32 0.0, %v1074
        %v1076 = vpop.f32.mrb[0].mxu0
        %v1077 = vadd.f32 0.0, %v1076
        %v1078 = vpop.f32.mrb[0].mxu0
        %v1079 = vadd.f32 0.0, %v1078
        %v1080 = vpop.f32.mrb[0].mxu0
        %v1081 = vadd.f32 0.0, %v1080
        %1082 = vmatprep.mubr.bf16.mxu0 0
        %1083 = vmatmul.mubr.bf16.gmra.mrb[0].mxu0 %v776
        %v1084 = vpop.f32.mrb[0].mxu0
        %v1085 = vadd.f32 0.0, %v1084
        %v1086 = vpop.f32.mrb[0].mxu0
        %v1087 = vadd.f32 0.0, %v1086
        %v1088 = vpop.f32.mrb[0].mxu0
        %v1089 = vadd.f32 0.0, %v1088
        %v1090 = vpop.f32.mrb[0].mxu0
        %v1091 = vadd.f32 0.0, %v1090
        %1092 = vmatprep.mubr.bf16.mxu0 0
        %1093 = vmatmul.mubr.bf16.gmra.mrb[0].mxu0 %v779
        %v1094 = vpop.f32.mrb[0].mxu0
        %v1095 = vadd.f32 0.0, %v1094
        %v1096 = vpop.f32.mrb[0].mxu0
        %v1097 = vadd.f32 0.0, %v1096
        %v1098 = vpop.f32.mrb[0].mxu0
        %v1099 = vadd.f32 0.0, %v1098
        %v1100 = vpop.f32.mrb[0].mxu0
        %v1101 = vadd.f32 0.0, %v1100
        %1102 = vmatprep.mubr.bf16.mxu0 0
        %1103 = vmatmul.mubr.bf16.gmra.mrb[0].mxu0 %v782
        %v1104 = vpop.f32.mrb[0].mxu0
        %v1105 = vadd.f32 0.0, %v1104
        %v1106 = vpop.f32.mrb[0].mxu0
        %v1107 = vadd.f32 0.0, %v1106
        %v1108 = vpop.f32.mrb[0].mxu0
        %v1109 = vadd.f32 0.0, %v1108
        %v1110 = vpop.f32.mrb[0].mxu0
        %v1111 = vadd.f32 0.0, %v1110
        %1112 = vmatprep.mubr.bf16.mxu0 0
        %1113 = vmatmul.mubr.bf16.gmra.mrb[0].mxu0 %v785
        %v1114 = vpop.f32.mrb[0].mxu0
        %v1115 = vadd.f32 0.0, %v1114
        %v1116 = vpop.f32.mrb[0].mxu0
        %v1117 = vadd.f32 0.0, %v1116
        %v1118 = vpop.f32.mrb[0].mxu0
        %v1119 = vadd.f32 0.0, %v1118
        %v1120 = vpop.f32.mrb[0].mxu0
        %v1121 = vadd.f32 0.0, %v1120
        %1122 = vmatprep.mubr.bf16.mxu0 0
        %1123 = vmatmul.mubr.bf16.gmra.mrb[0].mxu0 %v788
        %v1124 = vpop.f32.mrb[0].mxu0
        %v1125 = vadd.f32 0.0, %v1124
        %v1126 = vpop.f32.mrb[0].mxu0
        %v1127 = vadd.f32 0.0, %v1126
        %v1128 = vpop.f32.mrb[0].mxu0
        %v1129 = vadd.f32 0.0, %v1128
        %v1130 = vpop.f32.mrb[0].mxu0
        %v1131 = vadd.f32 0.0, %v1130
        %1132 = vmatprep.mubr.bf16.mxu0 0
        %1133 = vmatmul.mubr.bf16.gmra.mrb[0].mxu0 %v791
        %v1134 = vpop.f32.mrb[0].mxu0
        %v1135 = vadd.f32 0.0, %v1134
        %v1136 = vpop.f32.mrb[0].mxu0
        %v1137 = vadd.f32 0.0, %v1136
        %v1138 = vpop.f32.mrb[0].mxu0
        %v1139 = vadd.f32 0.0, %v1138
        %v1140 = vpop.f32.mrb[0].mxu0
        %v1141 = vadd.f32 0.0, %v1140
        %1142 = vmatprep.mubr.bf16.mxu0 0
        %1143 = vmatmul.mubr.bf16.gmra.mrb[0].mxu0 %v794
        %v1144 = vpop.f32.mrb[0].mxu0
        %v1145 = vadd.f32 0.0, %v1144
        %v1146 = vpop.f32.mrb[0].mxu0
        %v1147 = vadd.f32 0.0, %v1146
        %v1148 = vpop.f32.mrb[0].mxu0
        %v1149 = vadd.f32 0.0, %v1148
        %v1150 = vpop.f32.mrb[0].mxu0
        %v1151 = vadd.f32 0.0, %v1150
        %1152 = vmatprep.mubr.bf16.mxu0 0
        %1153 = vmatmul.mubr.bf16.gmra.mrb[0].mxu0 %v797
        %v1154 = vpop.f32.mrb[0].mxu0
        %v1155 = vadd.f32 0.0, %v1154
        %v1156 = vpop.f32.mrb[0].mxu0
        %v1157 = vadd.f32 0.0, %v1156
        %v1158 = vpop.f32.mrb[0].mxu0
        %v1159 = vadd.f32 0.0, %v1158
        %v1160 = vpop.f32.mrb[0].mxu0
        %v1161 = vadd.f32 0.0, %v1160
        %1162 = vmatprep.mubr.bf16.mxu0 0
        %1163 = vmatmul.mubr.bf16.gmra.mrb[0].mxu0 %v800
        %v1164 = vpop.f32.mrb[0].mxu0
        %v1165 = vadd.f32 0.0, %v1164
        %v1166 = vpop.f32.mrb[0].mxu0
        %v1167 = vadd.f32 0.0, %v1166
        %v1168 = vpop.f32.mrb[0].mxu0
        %v1169 = vadd.f32 0.0, %v1168
        %v1170 = vpop.f32.mrb[0].mxu0
        %v1171 = vadd.f32 0.0, %v1170
        %1172 = vmatprep.mubr.bf16.mxu0 0
        %1173 = vmatmul.mubr.bf16.gmra.mrb[0].mxu0 %v803
        %v1174 = vpop.f32.mrb[0].mxu0
        %v1175 = vadd.f32 0.0, %v1174
        %v1176 = vpop.f32.mrb[0].mxu0
        %v1177 = vadd.f32 0.0, %v1176
        %v1178 = vpop.f32.mrb[0].mxu0
        %v1179 = vadd.f32 0.0, %v1178
        %v1180 = vpop.f32.mrb[0].mxu0
        %v1181 = vadd.f32 0.0, %v1180
        %1182 = vmatprep.mubr.bf16.mxu0 0
        %1183 = vmatmul.mubr.bf16.gmra.mrb[0].mxu0 %v806
        %v1184 = vpop.f32.mrb[0].mxu0
        %v1185 = vadd.f32 0.0, %v1184
        %v1186 = vpop.f32.mrb[0].mxu0
        %v1187 = vadd.f32 0.0, %v1186
        %v1188 = vpop.f32.mrb[0].mxu0
        %v1189 = vadd.f32 0.0, %v1188
        %v1190 = vpop.f32.mrb[0].mxu0
        %v1191 = vadd.f32 0.0, %v1190
        %1192 = vmatprep.mubr.bf16.mxu0 0
        %1193 = vmatmul.mubr.bf16.gmra.mrb[0].mxu0 %v809
        %v1194 = vpop.f32.mrb[0].mxu0
        %v1195 = vadd.f32 0.0, %v1194
        %v1196 = vpop.f32.mrb[0].mxu0
        %v1197 = vadd.f32 0.0, %v1196
        %v1198 = vpop.f32.mrb[0].mxu0
        %v1199 = vadd.f32 0.0, %v1198
        %v1200 = vpop.f32.mrb[0].mxu0
        %v1201 = vadd.f32 0.0, %v1200
        %1202 = vmatprep.mubr.bf16.mxu0 0
        %1203 = vmatmul.mubr.bf16.gmra.mrb[0].mxu0 %v812
        %v1204 = vpop.f32.mrb[0].mxu0
        %v1205 = vadd.f32 0.0, %v1204
        %v1206 = vpop.f32.mrb[0].mxu0
        %v1207 = vadd.f32 0.0, %v1206
        %v1208 = vpop.f32.mrb[0].mxu0
        %v1209 = vadd.f32 0.0, %v1208
        %v1210 = vpop.f32.mrb[0].mxu0
        %v1211 = vadd.f32 0.0, %v1210
        %1212 = vdwg.mxu0
        %v1213 = vld [vmem:[#allocation3] sm:$0xf]
        %v1214 = vmax.f32 %v862, %v866
        %v1215 = vmax.f32 %v1214, %v872
        %v1216 = vmax.f32 %v1215, %v876
        %v1217 = vmax.f32 %v1216, %v882
        %v1218 = vmax.f32 %v1217, %v886
        %v1219 = vmax.f32 %v1218, %v892
        %v1220 = vmax.f32 %v1219, %v896
        %v1221 = vmax.f32 %v1220, %v902
        %v1222 = vmax.f32 %v1221, %v906
        %v1223 = vmax.f32 %v1222, %v912
        %v1224 = vmax.f32 %v1223, %v916
        %v1225 = vmax.f32 %v1224, %v922
        %v1226 = vmax.f32 %v1225, %v926
        %v1227 = vmax.f32 %v1226, %v932
        %v1228 = vmax.f32 %v1227, %v936
        %v1229 = vmax.f32 %v1228, %v942
        %v1230 = vmax.f32 %v1229, %v946
        %v1231 = vmax.f32 %v1230, %v952
        %v1232 = vmax.f32 %v1231, %v956
        %v1233 = vmax.f32 %v1232, %v962
        %v1234 = vmax.f32 %v1233, %v966
        %v1235 = vmax.f32 %v1234, %v972
        %v1236 = vmax.f32 %v1235, %v976
        %v1237 = vmax.f32 %v1236, %v982
        %v1238 = vmax.f32 %v1237, %v986
        %v1239 = vmax.f32 %v1238, %v992
        %v1240 = vmax.f32 %v1239, %v996
        %v1241 = vmax.f32 %v1240, %v1002
        %v1242 = vmax.f32 %v1241, %v1006
        %v1243 = vmax.f32 %v1242, %v1012
        %v1244 = vmax.f32 %v1243, %v1016
        %v1245 = vrot.slane %v1244, 4
        %v1246 = vmax.f32 %v1244, %v1245
        %v1247 = vrot.slane %v1246, 2
        %v1248 = vmax.f32 %v1246, %v1247
        %v1249 = vrot.slane %v1248, 1
        %v1250 = vmax.f32 %v1248, %v1249
        %v1251 = vmax.f32 %v864, %v868
        %v1252 = vmax.f32 %v1251, %v874
        %v1253 = vmax.f32 %v1252, %v878
        %v1254 = vmax.f32 %v1253, %v884
        %v1255 = vmax.f32 %v1254, %v888
        %v1256 = vmax.f32 %v1255, %v894
        %v1257 = vmax.f32 %v1256, %v898
        %v1258 = vmax.f32 %v1257, %v904
        %v1259 = vmax.f32 %v1258, %v908
        %v1260 = vmax.f32 %v1259, %v914
        %v1261 = vmax.f32 %v1260, %v918
        %v1262 = vmax.f32 %v1261, %v924
        %v1263 = vmax.f32 %v1262, %v928
        %v1264 = vmax.f32 %v1263, %v934
        %v1265 = vmax.f32 %v1264, %v938
        %v1266 = vmax.f32 %v1265, %v944
        %v1267 = vmax.f32 %v1266, %v948
        %v1268 = vmax.f32 %v1267, %v954
        %v1269 = vmax.f32 %v1268, %v958
        %v1270 = vmax.f32 %v1269, %v964
        %v1271 = vmax.f32 %v1270, %v968
        %v1272 = vmax.f32 %v1271, %v974
        %v1273 = vmax.f32 %v1272, %v978
        %v1274 = vmax.f32 %v1273, %v984
        %v1275 = vmax.f32 %v1274, %v988
        %v1276 = vmax.f32 %v1275, %v994
        %v1277 = vmax.f32 %v1276, %v998
        %v1278 = vmax.f32 %v1277, %v1004
        %v1279 = vmax.f32 %v1278, %v1008
        %v1280 = vmax.f32 %v1279, %v1014
        %v1281 = vmax.f32 %v1280, %v1018
        %v1282 = vrot.slane %v1281, 4
        %v1283 = vmax.f32 %v1281, %v1282
        %v1284 = vrot.slane %v1283, 2
        %v1285 = vmax.f32 %v1283, %v1284
        %v1286 = vrot.slane %v1285, 1
        %v1287 = vmax.f32 %v1285, %v1286
        %v1288 = vmax.f32 %v1055, %v1059
        %v1289 = vmax.f32 %v1288, %v1065
        %v1290 = vmax.f32 %v1289, %v1069
        %v1291 = vmax.f32 %v1290, %v1075
        %v1292 = vmax.f32 %v1291, %v1079
        %v1293 = vmax.f32 %v1292, %v1085
        %v1294 = vmax.f32 %v1293, %v1089
        %v1295 = vmax.f32 %v1294, %v1095
        %v1296 = vmax.f32 %v1295, %v1099
        %v1297 = vmax.f32 %v1296, %v1105
        %v1298 = vmax.f32 %v1297, %v1109
        %v1299 = vmax.f32 %v1298, %v1115
        %v1300 = vmax.f32 %v1299, %v1119
        %v1301 = vmax.f32 %v1300, %v1125
        %v1302 = vmax.f32 %v1301, %v1129
        %v1303 = vmax.f32 %v1302, %v1135
        %v1304 = vmax.f32 %v1303, %v1139
        %v1305 = vmax.f32 %v1304, %v1145
        %v1306 = vmax.f32 %v1305, %v1149
        %v1307 = vmax.f32 %v1306, %v1155
        %v1308 = vmax.f32 %v1307, %v1159
        %v1309 = vmax.f32 %v1308, %v1165
        %v1310 = vmax.f32 %v1309, %v1169
        %v1311 = vmax.f32 %v1310, %v1175
        %v1312 = vmax.f32 %v1311, %v1179
        %v1313 = vmax.f32 %v1312, %v1185
        %v1314 = vmax.f32 %v1313, %v1189
        %v1315 = vmax.f32 %v1314, %v1195
        %v1316 = vmax.f32 %v1315, %v1199
        %v1317 = vmax.f32 %v1316, %v1205
        %v1318 = vmax.f32 %v1317, %v1209
        %v1319 = vrot.slane %v1318, 4
        %v1320 = vmax.f32 %v1318, %v1319
        %v1321 = vrot.slane %v1320, 2
        %v1322 = vmax.f32 %v1320, %v1321
        %v1323 = vrot.slane %v1322, 1
        %v1324 = vmax.f32 %v1322, %v1323
        %v1325 = vmax.f32 %v1057, %v1061
        %v1326 = vmax.f32 %v1325, %v1067
        %v1327 = vmax.f32 %v1326, %v1071
        %v1328 = vmax.f32 %v1327, %v1077
        %v1329 = vmax.f32 %v1328, %v1081
        %v1330 = vmax.f32 %v1329, %v1087
        %v1331 = vmax.f32 %v1330, %v1091
        %v1332 = vmax.f32 %v1331, %v1097
        %v1333 = vmax.f32 %v1332, %v1101
        %v1334 = vmax.f32 %v1333, %v1107
        %v1335 = vmax.f32 %v1334, %v1111
        %v1336 = vmax.f32 %v1335, %v1117
        %v1337 = vmax.f32 %v1336, %v1121
        %v1338 = vmax.f32 %v1337, %v1127
        %v1339 = vmax.f32 %v1338, %v1131
        %v1340 = vmax.f32 %v1339, %v1137
        %v1341 = vmax.f32 %v1340, %v1141
        %v1342 = vmax.f32 %v1341, %v1147
        %v1343 = vmax.f32 %v1342, %v1151
        %v1344 = vmax.f32 %v1343, %v1157
        %v1345 = vmax.f32 %v1344, %v1161
        %v1346 = vmax.f32 %v1345, %v1167
        %v1347 = vmax.f32 %v1346, %v1171
        %v1348 = vmax.f32 %v1347, %v1177
        %v1349 = vmax.f32 %v1348, %v1181
        %v1350 = vmax.f32 %v1349, %v1187
        %v1351 = vmax.f32 %v1350, %v1191
        %v1352 = vmax.f32 %v1351, %v1197
        %v1353 = vmax.f32 %v1352, %v1201
        %v1354 = vmax.f32 %v1353, %v1207
        %v1355 = vmax.f32 %v1354, %v1211
        %v1356 = vrot.slane %v1355, 4
        %v1357 = vmax.f32 %v1355, %v1356
        %v1358 = vrot.slane %v1357, 2
        %v1359 = vmax.f32 %v1357, %v1358
        %v1360 = vrot.slane %v1359, 1
        %v1361 = vmax.f32 %v1359, %v1360
        %v1366 = vcombine.low %v1250, %v1287
        %v1367 = vcombine.low %v1324, %v1361
        %v1369 = vunpack.c.l.s4 1966171168
        %v1370 = vunpack.c.0.s8 %v1369
        %v1371 = vlaneseq
        %v1372 = vshrl.u32 %v1371, 7
        %v1373 = vsub.s32 %v1370, %v1372
        %v1374 = vrot.slane %v1366, %v1373
        %v1376 = vunpack.c.l.s4 1966171168
        %v1377 = vunpack.c.0.s8 %v1376
        %v1378 = vlaneseq
        %v1379 = vshrl.u32 %v1378, 7
        %v1380 = vsub.s32 %v1377, %v1379
        %v1381 = vrot.slane %v1367, %v1380
        %v1382 = vcombine.low %v1374, %v1381
        %v1384 = vunpack.c.l.s4 1966171168
        %v1385 = vunpack.c.0.s8 %v1384
        %v1386 = vlaneseq
        %v1387 = vshrl.u32 %v1386, 7
        %v1388 = vsub.s32 %v1385, %v1387
        %v1389 = vrot.slane %v1382, %v1388
        %v1391 = vmax.f32 %v1213, %v1389
        %v1392 = vsub.f32 %v1213, %v1391
        %v1393 = vmul.f32 %v1392, 1.442695
        %v1394 = vpow.pop %v1393
        %v1396 = vlaneseq
        %v1397 = vshrl.u32 %v1396, 7
        %v1398 = vsub.s32 0, %v1397
        %v1399 = vrot.slane %v1391, %v1398
        %v1400 = vlaneseq
        %v1401 = vshrl.u32 %v1400, 7
        %v1402 = vsub.s32 1, %v1401
        %v1403 = vrot.slane %v1391, %v1402
        %v1404 = vlaneseq
        %v1405 = vshrl.u32 %v1404, 7
        %v1406 = vsub.s32 2, %v1405
        %v1407 = vrot.slane %v1391, %v1406
        %v1408 = vlaneseq
        %v1409 = vshrl.u32 %v1408, 7
        %v1410 = vsub.s32 3, %v1409
        %v1411 = vrot.slane %v1391, %v1410
        %v1416 = vsub.f32 %v862, %v1399
        %v1417 = vsub.f32 %v864, %v1403
        %v1418 = vsub.f32 %v1055, %v1407
        %v1419 = vsub.f32 %v1057, %v1411
        %v1420 = vsub.f32 %v866, %v1399
        %v1421 = vsub.f32 %v868, %v1403
        %v1422 = vsub.f32 %v1059, %v1407
        %v1423 = vsub.f32 %v1061, %v1411
        %v1424 = vsub.f32 %v872, %v1399
        %v1425 = vsub.f32 %v874, %v1403
        %v1426 = vsub.f32 %v1065, %v1407
        %v1427 = vsub.f32 %v1067, %v1411
        %v1428 = vsub.f32 %v876, %v1399
        %v1429 = vsub.f32 %v878, %v1403
        %v1430 = vsub.f32 %v1069, %v1407
        %v1431 = vsub.f32 %v1071, %v1411
        %v1432 = vsub.f32 %v882, %v1399
        %v1433 = vsub.f32 %v884, %v1403
        %v1434 = vsub.f32 %v1075, %v1407
        %v1435 = vsub.f32 %v1077, %v1411
        %v1436 = vsub.f32 %v886, %v1399
        %v1437 = vsub.f32 %v888, %v1403
        %v1438 = vsub.f32 %v1079, %v1407
        %v1439 = vsub.f32 %v1081, %v1411
        %v1440 = vsub.f32 %v892, %v1399
        %v1441 = vsub.f32 %v894, %v1403
        %v1442 = vsub.f32 %v1085, %v1407
        %v1443 = vsub.f32 %v1087, %v1411
        %v1444 = vsub.f32 %v896, %v1399
        %v1445 = vsub.f32 %v898, %v1403
        %v1446 = vsub.f32 %v1089, %v1407
        %v1447 = vsub.f32 %v1091, %v1411
        %v1448 = vsub.f32 %v902, %v1399
        %v1449 = vsub.f32 %v904, %v1403
        %v1450 = vsub.f32 %v1095, %v1407
        %v1451 = vsub.f32 %v1097, %v1411
        %v1452 = vsub.f32 %v906, %v1399
        %v1453 = vsub.f32 %v908, %v1403
        %v1454 = vsub.f32 %v1099, %v1407
        %v1455 = vsub.f32 %v1101, %v1411
        %v1456 = vsub.f32 %v912, %v1399
        %v1457 = vsub.f32 %v914, %v1403
        %v1458 = vsub.f32 %v1105, %v1407
        %v1459 = vsub.f32 %v1107, %v1411
        %v1460 = vsub.f32 %v916, %v1399
        %v1461 = vsub.f32 %v918, %v1403
        %v1462 = vsub.f32 %v1109, %v1407
        %v1463 = vsub.f32 %v1111, %v1411
        %v1464 = vsub.f32 %v922, %v1399
        %v1465 = vsub.f32 %v924, %v1403
        %v1466 = vsub.f32 %v1115, %v1407
        %v1467 = vsub.f32 %v1117, %v1411
        %v1468 = vsub.f32 %v926, %v1399
        %v1469 = vsub.f32 %v928, %v1403
        %v1470 = vsub.f32 %v1119, %v1407
        %v1471 = vsub.f32 %v1121, %v1411
        %v1472 = vsub.f32 %v932, %v1399
        %v1473 = vsub.f32 %v934, %v1403
        %v1474 = vsub.f32 %v1125, %v1407
        %v1475 = vsub.f32 %v1127, %v1411
        %v1476 = vsub.f32 %v936, %v1399
        %v1477 = vsub.f32 %v938, %v1403
        %v1478 = vsub.f32 %v1129, %v1407
        %v1479 = vsub.f32 %v1131, %v1411
        %v1480 = vsub.f32 %v942, %v1399
        %v1481 = vsub.f32 %v944, %v1403
        %v1482 = vsub.f32 %v1135, %v1407
        %v1483 = vsub.f32 %v1137, %v1411
        %v1484 = vsub.f32 %v946, %v1399
        %v1485 = vsub.f32 %v948, %v1403
        %v1486 = vsub.f32 %v1139, %v1407
        %v1487 = vsub.f32 %v1141, %v1411
        %v1488 = vsub.f32 %v952, %v1399
        %v1489 = vsub.f32 %v954, %v1403
        %v1490 = vsub.f32 %v1145, %v1407
        %v1491 = vsub.f32 %v1147, %v1411
        %v1492 = vsub.f32 %v956, %v1399
        %v1493 = vsub.f32 %v958, %v1403
        %v1494 = vsub.f32 %v1149, %v1407
        %v1495 = vsub.f32 %v1151, %v1411
        %v1496 = vsub.f32 %v962, %v1399
        %v1497 = vsub.f32 %v964, %v1403
        %v1498 = vsub.f32 %v1155, %v1407
        %v1499 = vsub.f32 %v1157, %v1411
        %v1500 = vsub.f32 %v966, %v1399
        %v1501 = vsub.f32 %v968, %v1403
        %v1502 = vsub.f32 %v1159, %v1407
        %v1503 = vsub.f32 %v1161, %v1411
        %v1504 = vsub.f32 %v972, %v1399
        %v1505 = vsub.f32 %v974, %v1403
        %v1506 = vsub.f32 %v1165, %v1407
        %v1507 = vsub.f32 %v1167, %v1411
        %v1508 = vsub.f32 %v976, %v1399
        %v1509 = vsub.f32 %v978, %v1403
        %v1510 = vsub.f32 %v1169, %v1407
        %v1511 = vsub.f32 %v1171, %v1411
        %v1512 = vsub.f32 %v982, %v1399
        %v1513 = vsub.f32 %v984, %v1403
        %v1514 = vsub.f32 %v1175, %v1407
        %v1515 = vsub.f32 %v1177, %v1411
        %v1516 = vsub.f32 %v986, %v1399
        %v1517 = vsub.f32 %v988, %v1403
        %v1518 = vsub.f32 %v1179, %v1407
        %v1519 = vsub.f32 %v1181, %v1411
        %v1520 = vsub.f32 %v992, %v1399
        %v1521 = vsub.f32 %v994, %v1403
        %v1522 = vsub.f32 %v1185, %v1407
        %v1523 = vsub.f32 %v1187, %v1411
        %v1524 = vsub.f32 %v996, %v1399
        %v1525 = vsub.f32 %v998, %v1403
        %v1526 = vsub.f32 %v1189, %v1407
        %v1527 = vsub.f32 %v1191, %v1411
        %v1528 = vsub.f32 %v1002, %v1399
        %v1529 = vsub.f32 %v1004, %v1403
        %v1530 = vsub.f32 %v1195, %v1407
        %v1531 = vsub.f32 %v1197, %v1411
        %v1532 = vsub.f32 %v1006, %v1399
        %v1533 = vsub.f32 %v1008, %v1403
        %v1534 = vsub.f32 %v1199, %v1407
        %v1535 = vsub.f32 %v1201, %v1411
        %v1536 = vsub.f32 %v1012, %v1399
        %v1537 = vsub.f32 %v1014, %v1403
        %v1538 = vsub.f32 %v1205, %v1407
        %v1539 = vsub.f32 %v1207, %v1411
        %v1540 = vsub.f32 %v1016, %v1399
        %v1541 = vsub.f32 %v1018, %v1403
        %v1542 = vsub.f32 %v1209, %v1407
        %v1543 = vsub.f32 %v1211, %v1411
        %v1544 = vmul.f32 %v1416, 1.442695
        %v1545 = vpow.pop %v1544
        %v1546 = vmul.f32 %v1417, 1.442695
        %v1547 = vpow.pop %v1546
        %v1548 = vmul.f32 %v1418, 1.442695
        %v1549 = vpow.pop %v1548
        %v1550 = vmul.f32 %v1419, 1.442695
        %v1551 = vpow.pop %v1550
        %v1552 = vmul.f32 %v1420, 1.442695
        %v1553 = vpow.pop %v1552
        %v1554 = vmul.f32 %v1421, 1.442695
        %v1555 = vpow.pop %v1554
        %v1556 = vmul.f32 %v1422, 1.442695
        %v1557 = vpow.pop %v1556
        %v1558 = vmul.f32 %v1423, 1.442695
        %v1559 = vpow.pop %v1558
        %v1560 = vmul.f32 %v1424, 1.442695
        %v1561 = vpow.pop %v1560
        %v1562 = vmul.f32 %v1425, 1.442695
        %v1563 = vpow.pop %v1562
        %v1564 = vmul.f32 %v1426, 1.442695
        %v1565 = vpow.pop %v1564
        %v1566 = vmul.f32 %v1427, 1.442695
        %v1567 = vpow.pop %v1566
        %v1568 = vmul.f32 %v1428, 1.442695
        %v1569 = vpow.pop %v1568
        %v1570 = vmul.f32 %v1429, 1.442695
        %v1571 = vpow.pop %v1570
        %v1572 = vmul.f32 %v1430, 1.442695
        %v1573 = vpow.pop %v1572
        %v1574 = vmul.f32 %v1431, 1.442695
        %v1575 = vpow.pop %v1574
        %v1576 = vmul.f32 %v1432, 1.442695
        %v1577 = vpow.pop %v1576
        %v1578 = vmul.f32 %v1433, 1.442695
        %v1579 = vpow.pop %v1578
        %v1580 = vmul.f32 %v1434, 1.442695
        %v1581 = vpow.pop %v1580
        %v1582 = vmul.f32 %v1435, 1.442695
        %v1583 = vpow.pop %v1582
        %v1584 = vmul.f32 %v1436, 1.442695
        %v1585 = vpow.pop %v1584
        %v1586 = vmul.f32 %v1437, 1.442695
        %v1587 = vpow.pop %v1586
        %v1588 = vmul.f32 %v1438, 1.442695
        %v1589 = vpow.pop %v1588
        %v1590 = vmul.f32 %v1439, 1.442695
        %v1591 = vpow.pop %v1590
        %v1592 = vmul.f32 %v1440, 1.442695
        %v1593 = vpow.pop %v1592
        %v1594 = vmul.f32 %v1441, 1.442695
        %v1595 = vpow.pop %v1594
        %v1596 = vmul.f32 %v1442, 1.442695
        %v1597 = vpow.pop %v1596
        %v1598 = vmul.f32 %v1443, 1.442695
        %v1599 = vpow.pop %v1598
        %v1600 = vmul.f32 %v1444, 1.442695
        %v1601 = vpow.pop %v1600
        %v1602 = vmul.f32 %v1445, 1.442695
        %v1603 = vpow.pop %v1602
        %v1604 = vmul.f32 %v1446, 1.442695
        %v1605 = vpow.pop %v1604
        %v1606 = vmul.f32 %v1447, 1.442695
        %v1607 = vpow.pop %v1606
        %v1608 = vmul.f32 %v1448, 1.442695
        %v1609 = vpow.pop %v1608
        %v1610 = vmul.f32 %v1449, 1.442695
        %v1611 = vpow.pop %v1610
        %v1612 = vmul.f32 %v1450, 1.442695
        %v1613 = vpow.pop %v1612
        %v1614 = vmul.f32 %v1451, 1.442695
        %v1615 = vpow.pop %v1614
        %v1616 = vmul.f32 %v1452, 1.442695
        %v1617 = vpow.pop %v1616
        %v1618 = vmul.f32 %v1453, 1.442695
        %v1619 = vpow.pop %v1618
        %v1620 = vmul.f32 %v1454, 1.442695
        %v1621 = vpow.pop %v1620
        %v1622 = vmul.f32 %v1455, 1.442695
        %v1623 = vpow.pop %v1622
        %v1624 = vmul.f32 %v1456, 1.442695
        %v1625 = vpow.pop %v1624
        %v1626 = vmul.f32 %v1457, 1.442695
        %v1627 = vpow.pop %v1626
        %v1628 = vmul.f32 %v1458, 1.442695
        %v1629 = vpow.pop %v1628
        %v1630 = vmul.f32 %v1459, 1.442695
        %v1631 = vpow.pop %v1630
        %v1632 = vmul.f32 %v1460, 1.442695
        %v1633 = vpow.pop %v1632
        %v1634 = vmul.f32 %v1461, 1.442695
        %v1635 = vpow.pop %v1634
        %v1636 = vmul.f32 %v1462, 1.442695
        %v1637 = vpow.pop %v1636
        %v1638 = vmul.f32 %v1463, 1.442695
        %v1639 = vpow.pop %v1638
        %v1640 = vmul.f32 %v1464, 1.442695
        %v1641 = vpow.pop %v1640
        %v1642 = vmul.f32 %v1465, 1.442695
        %v1643 = vpow.pop %v1642
        %v1644 = vmul.f32 %v1466, 1.442695
        %v1645 = vpow.pop %v1644
        %v1646 = vmul.f32 %v1467, 1.442695
        %v1647 = vpow.pop %v1646
        %v1648 = vmul.f32 %v1468, 1.442695
        %v1649 = vpow.pop %v1648
        %v1650 = vmul.f32 %v1469, 1.442695
        %v1651 = vpow.pop %v1650
        %v1652 = vmul.f32 %v1470, 1.442695
        %v1653 = vpow.pop %v1652
        %v1654 = vmul.f32 %v1471, 1.442695
        %v1655 = vpow.pop %v1654
        %v1656 = vmul.f32 %v1472, 1.442695
        %v1657 = vpow.pop %v1656
        %v1658 = vmul.f32 %v1473, 1.442695
        %v1659 = vpow.pop %v1658
        %v1660 = vmul.f32 %v1474, 1.442695
        %v1661 = vpow.pop %v1660
        %v1662 = vmul.f32 %v1475, 1.442695
        %v1663 = vpow.pop %v1662
        %v1664 = vmul.f32 %v1476, 1.442695
        %v1665 = vpow.pop %v1664
        %v1666 = vmul.f32 %v1477, 1.442695
        %v1667 = vpow.pop %v1666
        %v1668 = vmul.f32 %v1478, 1.442695
        %v1669 = vpow.pop %v1668
        %v1670 = vmul.f32 %v1479, 1.442695
        %v1671 = vpow.pop %v1670
        %v1672 = vmul.f32 %v1480, 1.442695
        %v1673 = vpow.pop %v1672
        %v1674 = vmul.f32 %v1481, 1.442695
        %v1675 = vpow.pop %v1674
        %v1676 = vmul.f32 %v1482, 1.442695
        %v1677 = vpow.pop %v1676
        %v1678 = vmul.f32 %v1483, 1.442695
        %v1679 = vpow.pop %v1678
        %v1680 = vmul.f32 %v1484, 1.442695
        %v1681 = vpow.pop %v1680
        %v1682 = vmul.f32 %v1485, 1.442695
        %v1683 = vpow.pop %v1682
        %v1684 = vmul.f32 %v1486, 1.442695
        %v1685 = vpow.pop %v1684
        %v1686 = vmul.f32 %v1487, 1.442695
        %v1687 = vpow.pop %v1686
        %v1688 = vmul.f32 %v1488, 1.442695
        %v1689 = vpow.pop %v1688
        %v1690 = vmul.f32 %v1489, 1.442695
        %v1691 = vpow.pop %v1690
        %v1692 = vmul.f32 %v1490, 1.442695
        %v1693 = vpow.pop %v1692
        %v1694 = vmul.f32 %v1491, 1.442695
        %v1695 = vpow.pop %v1694
        %v1696 = vmul.f32 %v1492, 1.442695
        %v1697 = vpow.pop %v1696
        %v1698 = vmul.f32 %v1493, 1.442695
        %v1699 = vpow.pop %v1698
        %v1700 = vmul.f32 %v1494, 1.442695
        %v1701 = vpow.pop %v1700
        %v1702 = vmul.f32 %v1495, 1.442695
        %v1703 = vpow.pop %v1702
        %v1704 = vmul.f32 %v1496, 1.442695
        %v1705 = vpow.pop %v1704
        %v1706 = vmul.f32 %v1497, 1.442695
        %v1707 = vpow.pop %v1706
        %v1708 = vmul.f32 %v1498, 1.442695
        %v1709 = vpow.pop %v1708
        %v1710 = vmul.f32 %v1499, 1.442695
        %v1711 = vpow.pop %v1710
        %v1712 = vmul.f32 %v1500, 1.442695
        %v1713 = vpow.pop %v1712
        %v1714 = vmul.f32 %v1501, 1.442695
        %v1715 = vpow.pop %v1714
        %v1716 = vmul.f32 %v1502, 1.442695
        %v1717 = vpow.pop %v1716
        %v1718 = vmul.f32 %v1503, 1.442695
        %v1719 = vpow.pop %v1718
        %v1720 = vmul.f32 %v1504, 1.442695
        %v1721 = vpow.pop %v1720
        %v1722 = vmul.f32 %v1505, 1.442695
        %v1723 = vpow.pop %v1722
        %v1724 = vmul.f32 %v1506, 1.442695
        %v1725 = vpow.pop %v1724
        %v1726 = vmul.f32 %v1507, 1.442695
        %v1727 = vpow.pop %v1726
        %v1728 = vmul.f32 %v1508, 1.442695
        %v1729 = vpow.pop %v1728
        %v1730 = vmul.f32 %v1509, 1.442695
        %v1731 = vpow.pop %v1730
        %v1732 = vmul.f32 %v1510, 1.442695
        %v1733 = vpow.pop %v1732
        %v1734 = vmul.f32 %v1511, 1.442695
        %v1735 = vpow.pop %v1734
        %v1736 = vmul.f32 %v1512, 1.442695
        %v1737 = vpow.pop %v1736
        %v1738 = vmul.f32 %v1513, 1.442695
        %v1739 = vpow.pop %v1738
        %v1740 = vmul.f32 %v1514, 1.442695
        %v1741 = vpow.pop %v1740
        %v1742 = vmul.f32 %v1515, 1.442695
        %v1743 = vpow.pop %v1742
        %v1744 = vmul.f32 %v1516, 1.442695
        %v1745 = vpow.pop %v1744
        %v1746 = vmul.f32 %v1517, 1.442695
        %v1747 = vpow.pop %v1746
        %v1748 = vmul.f32 %v1518, 1.442695
        %v1749 = vpow.pop %v1748
        %v1750 = vmul.f32 %v1519, 1.442695
        %v1751 = vpow.pop %v1750
        %v1752 = vmul.f32 %v1520, 1.442695
        %v1753 = vpow.pop %v1752
        %v1754 = vmul.f32 %v1521, 1.442695
        %v1755 = vpow.pop %v1754
        %v1756 = vmul.f32 %v1522, 1.442695
        %v1757 = vpow.pop %v1756
        %v1758 = vmul.f32 %v1523, 1.442695
        %v1759 = vpow.pop %v1758
        %v1760 = vmul.f32 %v1524, 1.442695
        %v1761 = vpow.pop %v1760
        %v1762 = vmul.f32 %v1525, 1.442695
        %v1763 = vpow.pop %v1762
        %v1764 = vmul.f32 %v1526, 1.442695
        %v1765 = vpow.pop %v1764
        %v1766 = vmul.f32 %v1527, 1.442695
        %v1767 = vpow.pop %v1766
        %v1768 = vmul.f32 %v1528, 1.442695
        %v1769 = vpow.pop %v1768
        %v1770 = vmul.f32 %v1529, 1.442695
        %v1771 = vpow.pop %v1770
        %v1772 = vmul.f32 %v1530, 1.442695
        %v1773 = vpow.pop %v1772
        %v1774 = vmul.f32 %v1531, 1.442695
        %v1775 = vpow.pop %v1774
        %v1776 = vmul.f32 %v1532, 1.442695
        %v1777 = vpow.pop %v1776
        %v1778 = vmul.f32 %v1533, 1.442695
        %v1779 = vpow.pop %v1778
        %v1780 = vmul.f32 %v1534, 1.442695
        %v1781 = vpow.pop %v1780
        %v1782 = vmul.f32 %v1535, 1.442695
        %v1783 = vpow.pop %v1782
        %v1784 = vmul.f32 %v1536, 1.442695
        %v1785 = vpow.pop %v1784
        %v1786 = vmul.f32 %v1537, 1.442695
        %v1787 = vpow.pop %v1786
        %v1788 = vmul.f32 %v1538, 1.442695
        %v1789 = vpow.pop %v1788
        %v1790 = vmul.f32 %v1539, 1.442695
        %v1791 = vpow.pop %v1790
        %v1792 = vmul.f32 %v1540, 1.442695
        %v1793 = vpow.pop %v1792
        %v1794 = vmul.f32 %v1541, 1.442695
        %v1795 = vpow.pop %v1794
        %v1796 = vmul.f32 %v1542, 1.442695
        %v1797 = vpow.pop %v1796
        %v1798 = vmul.f32 %v1543, 1.442695
        %v1799 = vpow.pop %v1798
        %v1800 = vld [vmem:[#allocation4] sm:$0xf]
        %v1801 = vmul.f32 %v1394, %v1800
        %v1802 = vadd.f32 %v1545, %v1553
        %v1803 = vadd.f32 %v1802, %v1561
        %v1804 = vadd.f32 %v1803, %v1569
        %v1805 = vadd.f32 %v1804, %v1577
        %v1806 = vadd.f32 %v1805, %v1585
        %v1807 = vadd.f32 %v1806, %v1593
        %v1808 = vadd.f32 %v1807, %v1601
        %v1809 = vadd.f32 %v1808, %v1609
        %v1810 = vadd.f32 %v1809, %v1617
        %v1811 = vadd.f32 %v1810, %v1625
        %v1812 = vadd.f32 %v1811, %v1633
        %v1813 = vadd.f32 %v1812, %v1641
        %v1814 = vadd.f32 %v1813, %v1649
        %v1815 = vadd.f32 %v1814, %v1657
        %v1816 = vadd.f32 %v1815, %v1665
        %v1817 = vadd.f32 %v1816, %v1673
        %v1818 = vadd.f32 %v1817, %v1681
        %v1819 = vadd.f32 %v1818, %v1689
        %v1820 = vadd.f32 %v1819, %v1697
        %v1821 = vadd.f32 %v1820, %v1705
        %v1822 = vadd.f32 %v1821, %v1713
        %v1823 = vadd.f32 %v1822, %v1721
        %v1824 = vadd.f32 %v1823, %v1729
        %v1825 = vadd.f32 %v1824, %v1737
        %v1826 = vadd.f32 %v1825, %v1745
        %v1827 = vadd.f32 %v1826, %v1753
        %v1828 = vadd.f32 %v1827, %v1761
        %v1829 = vadd.f32 %v1828, %v1769
        %v1830 = vadd.f32 %v1829, %v1777
        %v1831 = vadd.f32 %v1830, %v1785
        %v1832 = vadd.f32 %v1831, %v1793
        %v1833 = vrot.slane %v1832, 4
        %v1834 = vadd.f32 %v1832, %v1833
        %v1835 = vrot.slane %v1834, 2
        %v1836 = vadd.f32 %v1834, %v1835
        %v1837 = vrot.slane %v1836, 1
        %v1838 = vadd.f32 %v1836, %v1837
        %v1839 = vadd.f32 %v1547, %v1555
        %v1840 = vadd.f32 %v1839, %v1563
        %v1841 = vadd.f32 %v1840, %v1571
        %v1842 = vadd.f32 %v1841, %v1579
        %v1843 = vadd.f32 %v1842, %v1587
        %v1844 = vadd.f32 %v1843, %v1595
        %v1845 = vadd.f32 %v1844, %v1603
        %v1846 = vadd.f32 %v1845, %v1611
        %v1847 = vadd.f32 %v1846, %v1619
        %v1848 = vadd.f32 %v1847, %v1627
        %v1849 = vadd.f32 %v1848, %v1635
        %v1850 = vadd.f32 %v1849, %v1643
        %v1851 = vadd.f32 %v1850, %v1651
        %v1852 = vadd.f32 %v1851, %v1659
        %v1853 = vadd.f32 %v1852, %v1667
        %v1854 = vadd.f32 %v1853, %v1675
        %v1855 = vadd.f32 %v1854, %v1683
        %v1856 = vadd.f32 %v1855, %v1691
        %v1857 = vadd.f32 %v1856, %v1699
        %v1858 = vadd.f32 %v1857, %v1707
        %v1859 = vadd.f32 %v1858, %v1715
        %v1860 = vadd.f32 %v1859, %v1723
        %v1861 = vadd.f32 %v1860, %v1731
        %v1862 = vadd.f32 %v1861, %v1739
        %v1863 = vadd.f32 %v1862, %v1747
        %v1864 = vadd.f32 %v1863, %v1755
        %v1865 = vadd.f32 %v1864, %v1763
        %v1866 = vadd.f32 %v1865, %v1771
        %v1867 = vadd.f32 %v1866, %v1779
        %v1868 = vadd.f32 %v1867, %v1787
        %v1869 = vadd.f32 %v1868, %v1795
        %v1870 = vrot.slane %v1869, 4
        %v1871 = vadd.f32 %v1869, %v1870
        %v1872 = vrot.slane %v1871, 2
        %v1873 = vadd.f32 %v1871, %v1872
        %v1874 = vrot.slane %v1873, 1
        %v1875 = vadd.f32 %v1873, %v1874
        %v1876 = vadd.f32 %v1549, %v1557
        %v1877 = vadd.f32 %v1876, %v1565
        %v1878 = vadd.f32 %v1877, %v1573
        %v1879 = vadd.f32 %v1878, %v1581
        %v1880 = vadd.f32 %v1879, %v1589
        %v1881 = vadd.f32 %v1880, %v1597
        %v1882 = vadd.f32 %v1881, %v1605
        %v1883 = vadd.f32 %v1882, %v1613
        %v1884 = vadd.f32 %v1883, %v1621
        %v1885 = vadd.f32 %v1884, %v1629
        %v1886 = vadd.f32 %v1885, %v1637
        %v1887 = vadd.f32 %v1886, %v1645
        %v1888 = vadd.f32 %v1887, %v1653
        %v1889 = vadd.f32 %v1888, %v1661
        %v1890 = vadd.f32 %v1889, %v1669
        %v1891 = vadd.f32 %v1890, %v1677
        %v1892 = vadd.f32 %v1891, %v1685
        %v1893 = vadd.f32 %v1892, %v1693
        %v1894 = vadd.f32 %v1893, %v1701
        %v1895 = vadd.f32 %v1894, %v1709
        %v1896 = vadd.f32 %v1895, %v1717
        %v1897 = vadd.f32 %v1896, %v1725
        %v1898 = vadd.f32 %v1897, %v1733
        %v1899 = vadd.f32 %v1898, %v1741
        %v1900 = vadd.f32 %v1899, %v1749
        %v1901 = vadd.f32 %v1900, %v1757
        %v1902 = vadd.f32 %v1901, %v1765
        %v1903 = vadd.f32 %v1902, %v1773
        %v1904 = vadd.f32 %v1903, %v1781
        %v1905 = vadd.f32 %v1904, %v1789
        %v1906 = vadd.f32 %v1905, %v1797
        %v1907 = vrot.slane %v1906, 4
        %v1908 = vadd.f32 %v1906, %v1907
        %v1909 = vrot.slane %v1908, 2
        %v1910 = vadd.f32 %v1908, %v1909
        %v1911 = vrot.slane %v1910, 1
        %v1912 = vadd.f32 %v1910, %v1911
        %v1913 = vadd.f32 %v1551, %v1559
        %v1914 = vadd.f32 %v1913, %v1567
        %v1915 = vadd.f32 %v1914, %v1575
        %v1916 = vadd.f32 %v1915, %v1583
        %v1917 = vadd.f32 %v1916, %v1591
        %v1918 = vadd.f32 %v1917, %v1599
        %v1919 = vadd.f32 %v1918, %v1607
        %v1920 = vadd.f32 %v1919, %v1615
        %v1921 = vadd.f32 %v1920, %v1623
        %v1922 = vadd.f32 %v1921, %v1631
        %v1923 = vadd.f32 %v1922, %v1639
        %v1924 = vadd.f32 %v1923, %v1647
        %v1925 = vadd.f32 %v1924, %v1655
        %v1926 = vadd.f32 %v1925, %v1663
        %v1927 = vadd.f32 %v1926, %v1671
        %v1928 = vadd.f32 %v1927, %v1679
        %v1929 = vadd.f32 %v1928, %v1687
        %v1930 = vadd.f32 %v1929, %v1695
        %v1931 = vadd.f32 %v1930, %v1703
        %v1932 = vadd.f32 %v1931, %v1711
        %v1933 = vadd.f32 %v1932, %v1719
        %v1934 = vadd.f32 %v1933, %v1727
        %v1935 = vadd.f32 %v1934, %v1735
        %v1936 = vadd.f32 %v1935, %v1743
        %v1937 = vadd.f32 %v1936, %v1751
        %v1938 = vadd.f32 %v1937, %v1759
        %v1939 = vadd.f32 %v1938, %v1767
        %v1940 = vadd.f32 %v1939, %v1775
        %v1941 = vadd.f32 %v1940, %v1783
        %v1942 = vadd.f32 %v1941, %v1791
        %v1943 = vadd.f32 %v1942, %v1799
        %v1944 = vrot.slane %v1943, 4
        %v1945 = vadd.f32 %v1943, %v1944
        %v1946 = vrot.slane %v1945, 2
        %v1947 = vadd.f32 %v1945, %v1946
        %v1948 = vrot.slane %v1947, 1
        %v1949 = vadd.f32 %v1947, %v1948
        %v1954 = vcombine.low %v1838, %v1875
        %v1955 = vcombine.low %v1912, %v1949
        %v1957 = vunpack.c.l.s4 1966171168
        %v1958 = vunpack.c.0.s8 %v1957
        %v1959 = vlaneseq
        %v1960 = vshrl.u32 %v1959, 7
        %v1961 = vsub.s32 %v1958, %v1960
        %v1962 = vrot.slane %v1954, %v1961
        %v1964 = vunpack.c.l.s4 1966171168
        %v1965 = vunpack.c.0.s8 %v1964
        %v1966 = vlaneseq
        %v1967 = vshrl.u32 %v1966, 7
        %v1968 = vsub.s32 %v1965, %v1967
        %v1969 = vrot.slane %v1955, %v1968
        %v1970 = vcombine.low %v1962, %v1969
        %v1972 = vunpack.c.l.s4 1966171168
        %v1973 = vunpack.c.0.s8 %v1972
        %v1974 = vlaneseq
        %v1975 = vshrl.u32 %v1974, 7
        %v1976 = vsub.s32 %v1973, %v1975
        %v1977 = vrot.slane %v1970, %v1976
        %v1979 = vadd.f32 %v1801, %v1977
        %v1980 = vlaneseq
        %vm1981 = vcmp.ge.s32.totalorder %v1980, 0
        %vm1982 = vcmp.lt.s32.totalorder %v1980, 512
        %vm1983 = vmand %vm1981, %vm1982
        %1984 = vst.msk [vmem:[#allocation4] sm:$0xf] %vm1983, %v1979
        %v1985 = vld [vmem:[#allocation5] sm:$0xff]
        %v1986 = vld [vmem:[#allocation5 + $0x8] sm:$0xff]
        %v1987 = vld [vmem:[#allocation5 + $0x10] sm:$0xff]
        %v1988 = vld [vmem:[#allocation5 + $0x18] sm:$0xff]
        %v1989 = vld [vmem:[#allocation5 + $0x20] sm:$0xff]
        %v1990 = vld [vmem:[#allocation5 + $0x28] sm:$0xff]
        %v1991 = vld [vmem:[#allocation5 + $0x30] sm:$0xff]
        %v1992 = vld [vmem:[#allocation5 + $0x38] sm:$0xff]
        %v1993 = vld [vmem:[#allocation5 + $0x40] sm:$0xff]
        %v1994 = vld [vmem:[#allocation5 + $0x48] sm:$0xff]
        %v1995 = vld [vmem:[#allocation5 + $0x50] sm:$0xff]
        %v1996 = vld [vmem:[#allocation5 + $0x58] sm:$0xff]
        %v1997 = vld [vmem:[#allocation5 + $0x60] sm:$0xff]
        %v1998 = vld [vmem:[#allocation5 + $0x68] sm:$0xff]
        %v1999 = vld [vmem:[#allocation5 + $0x70] sm:$0xff]
        %v2000 = vld [vmem:[#allocation5 + $0x78] sm:$0xff]
        %v2002 = vlaneseq
        %v2003 = vshrl.u32 %v2002, 7
        %v2004 = vsub.s32 0, %v2003
        %v2005 = vrot.slane %v1394, %v2004
        %v2006 = vlaneseq
        %v2007 = vshrl.u32 %v2006, 7
        %v2008 = vsub.s32 1, %v2007
        %v2009 = vrot.slane %v1394, %v2008
        %v2010 = vlaneseq
        %v2011 = vshrl.u32 %v2010, 7
        %v2012 = vsub.s32 2, %v2011
        %v2013 = vrot.slane %v1394, %v2012
        %v2014 = vlaneseq
        %v2015 = vshrl.u32 %v2014, 7
        %v2016 = vsub.s32 3, %v2015
        %v2017 = vrot.slane %v1394, %v2016
        %v2022 = vmul.f32 %v2005, %v1985
        %v2023 = vmul.f32 %v2009, %v1986
        %v2024 = vmul.f32 %v2013, %v1987
        %v2025 = vmul.f32 %v2017, %v1988
        %v2026 = vmul.f32 %v2005, %v1989
        %v2027 = vmul.f32 %v2009, %v1990
        %v2028 = vmul.f32 %v2013, %v1991
        %v2029 = vmul.f32 %v2017, %v1992
        %v2030 = vmul.f32 %v2005, %v1993
        %v2031 = vmul.f32 %v2009, %v1994
        %v2032 = vmul.f32 %v2013, %v1995
        %v2033 = vmul.f32 %v2017, %v1996
        %v2034 = vmul.f32 %v2005, %v1997
        %v2035 = vmul.f32 %v2009, %v1998
        %v2036 = vmul.f32 %v2013, %v1999
        %v2037 = vmul.f32 %v2017, %v2000
        %v2038 = vpack.c.bf16 %v1553, %v1545
        %v2039 = vpack.c.bf16 %v1555, %v1547
        %v2040 = vpack.c.bf16 %v1557, %v1549
        %v2041 = vpack.c.bf16 %v1559, %v1551
        %v2042 = vpack.c.bf16 %v1569, %v1561
        %v2043 = vpack.c.bf16 %v1571, %v1563
        %v2044 = vpack.c.bf16 %v1573, %v1565
        %v2045 = vpack.c.bf16 %v1575, %v1567
        %v2046 = vpack.c.bf16 %v1585, %v1577
        %v2047 = vpack.c.bf16 %v1587, %v1579
        %v2048 = vpack.c.bf16 %v1589, %v1581
        %v2049 = vpack.c.bf16 %v1591, %v1583
        %v2050 = vpack.c.bf16 %v1601, %v1593
        %v2051 = vpack.c.bf16 %v1603, %v1595
        %v2052 = vpack.c.bf16 %v1605, %v1597
        %v2053 = vpack.c.bf16 %v1607, %v1599
        %v2054 = vpack.c.bf16 %v1617, %v1609
        %v2055 = vpack.c.bf16 %v1619, %v1611
        %v2056 = vpack.c.bf16 %v1621, %v1613
        %v2057 = vpack.c.bf16 %v1623, %v1615
        %v2058 = vpack.c.bf16 %v1633, %v1625
        %v2059 = vpack.c.bf16 %v1635, %v1627
        %v2060 = vpack.c.bf16 %v1637, %v1629
        %v2061 = vpack.c.bf16 %v1639, %v1631
        %v2062 = vpack.c.bf16 %v1649, %v1641
        %v2063 = vpack.c.bf16 %v1651, %v1643
        %v2064 = vpack.c.bf16 %v1653, %v1645
        %v2065 = vpack.c.bf16 %v1655, %v1647
        %v2066 = vpack.c.bf16 %v1665, %v1657
        %v2067 = vpack.c.bf16 %v1667, %v1659
        %v2068 = vpack.c.bf16 %v1669, %v1661
        %v2069 = vpack.c.bf16 %v1671, %v1663
        %v2070 = vpack.c.bf16 %v1681, %v1673
        %v2071 = vpack.c.bf16 %v1683, %v1675
        %v2072 = vpack.c.bf16 %v1685, %v1677
        %v2073 = vpack.c.bf16 %v1687, %v1679
        %v2074 = vpack.c.bf16 %v1697, %v1689
        %v2075 = vpack.c.bf16 %v1699, %v1691
        %v2076 = vpack.c.bf16 %v1701, %v1693
        %v2077 = vpack.c.bf16 %v1703, %v1695
        %v2078 = vpack.c.bf16 %v1713, %v1705
        %v2079 = vpack.c.bf16 %v1715, %v1707
        %v2080 = vpack.c.bf16 %v1717, %v1709
        %v2081 = vpack.c.bf16 %v1719, %v1711
        %v2082 = vpack.c.bf16 %v1729, %v1721
        %v2083 = vpack.c.bf16 %v1731, %v1723
        %v2084 = vpack.c.bf16 %v1733, %v1725
        %v2085 = vpack.c.bf16 %v1735, %v1727
        %v2086 = vpack.c.bf16 %v1745, %v1737
        %v2087 = vpack.c.bf16 %v1747, %v1739
        %v2088 = vpack.c.bf16 %v1749, %v1741
        %v2089 = vpack.c.bf16 %v1751, %v1743
        %v2090 = vpack.c.bf16 %v1761, %v1753
        %v2091 = vpack.c.bf16 %v1763, %v1755
        %v2092 = vpack.c.bf16 %v1765, %v1757
        %v2093 = vpack.c.bf16 %v1767, %v1759
        %v2094 = vpack.c.bf16 %v1777, %v1769
        %v2095 = vpack.c.bf16 %v1779, %v1771
        %v2096 = vpack.c.bf16 %v1781, %v1773
        %v2097 = vpack.c.bf16 %v1783, %v1775
        %v2098 = vpack.c.bf16 %v1793, %v1785
        %v2099 = vpack.c.bf16 %v1795, %v1787
        %v2100 = vpack.c.bf16 %v1797, %v1789
        %v2101 = vpack.c.bf16 %v1799, %v1791
        %2102 = vmatprep.subr.bf16.mxu0 %v2039
        %2103 = vmatpush1.bf16.msra.mxu0 %v2038
        %2104 = vmatprep.subr.bf16.mxu0 %v2043
        %2105 = vmatpush1.bf16.msra.mxu0 %v2042
        %2106 = vmatprep.subr.bf16.mxu0 %v2047
        %2107 = vmatpush1.bf16.msra.mxu0 %v2046
        %2108 = vmatprep.subr.bf16.mxu0 %v2051
        %2109 = vmatpush1.bf16.msra.mxu0 %v2050
        %2110 = vmatprep.subr.bf16.mxu0 %v2055
        %2111 = vmatpush1.bf16.msra.mxu0 %v2054
        %2112 = vmatprep.subr.bf16.mxu0 %v2059
        %2113 = vmatpush1.bf16.msra.mxu0 %v2058
        %2114 = vmatprep.subr.bf16.mxu0 %v2063
        %2115 = vmatpush1.bf16.msra.mxu0 %v2062
        %2116 = vmatprep.subr.bf16.mxu0 %v2067
        %2117 = vmatpush1.bf16.msra.mxu0 %v2066
        %2118 = vmatprep.subr.bf16.mxu0 %v2071
        %2119 = vmatpush1.bf16.msra.mxu0 %v2070
        %2120 = vmatprep.subr.bf16.mxu0 %v2075
        %2121 = vmatpush1.bf16.msra.mxu0 %v2074
        %2122 = vmatprep.subr.bf16.mxu0 %v2079
        %2123 = vmatpush1.bf16.msra.mxu0 %v2078
        %2124 = vmatprep.subr.bf16.mxu0 %v2083
        %2125 = vmatpush1.bf16.msra.mxu0 %v2082
        %2126 = vmatprep.subr.bf16.mxu0 %v2087
        %2127 = vmatpush1.bf16.msra.mxu0 %v2086
        %2128 = vmatprep.subr.bf16.mxu0 %v2091
        %2129 = vmatpush1.bf16.msra.mxu0 %v2090
        %2130 = vmatprep.subr.bf16.mxu0 %v2095
        %2131 = vmatpush1.bf16.msra.mxu0 %v2094
        %2132 = vmatprep.subr.bf16.mxu0 %v2099
        %2133 = vmatpush1.bf16.msra.mxu0 %v2098
        %2134 = vmatprep.mubr.bf16.mxu0 %v670
        %2135 = vmatmul.mubr.bf16.gmra.mrb[0].mxu0 %v669
        %v2136 = vpop.f32.mrb[0].mxu0
        %v2137 = vadd.f32 0.0, %v2136
        %v2138 = vpop.f32.mrb[0].mxu0
        %v2139 = vadd.f32 0.0, %v2138
        %v2140 = vpop.f32.mrb[0].mxu0
        %v2141 = vadd.f32 0.0, %v2140
        %v2142 = vpop.f32.mrb[0].mxu0
        %v2143 = vadd.f32 0.0, %v2142
        %2144 = vmatprep.mubr.bf16.mxu0 %v672
        %2145 = vmatmul.mubr.bf16.gmra.mrb[0].mxu0 %v671
        %v2146 = vpop.f32.mrb[0].mxu0
        %v2147 = vadd.f32 0.0, %v2146
        %v2148 = vpop.f32.mrb[0].mxu0
        %v2149 = vadd.f32 0.0, %v2148
        %v2150 = vpop.f32.mrb[0].mxu0
        %v2151 = vadd.f32 0.0, %v2150
        %v2152 = vpop.f32.mrb[0].mxu0
        %v2153 = vadd.f32 0.0, %v2152
        %2154 = vdwg.mxu0
        %2155 = vmatprep.subr.bf16.mxu0 %v2041
        %2156 = vmatpush1.bf16.msra.mxu0 %v2040
        %2157 = vmatprep.subr.bf16.mxu0 %v2045
        %2158 = vmatpush1.bf16.msra.mxu0 %v2044
        %2159 = vmatprep.subr.bf16.mxu0 %v2049
        %2160 = vmatpush1.bf16.msra.mxu0 %v2048
        %2161 = vmatprep.subr.bf16.mxu0 %v2053
        %2162 = vmatpush1.bf16.msra.mxu0 %v2052
        %2163 = vmatprep.subr.bf16.mxu0 %v2057
        %2164 = vmatpush1.bf16.msra.mxu0 %v2056
        %2165 = vmatprep.subr.bf16.mxu0 %v2061
        %2166 = vmatpush1.bf16.msra.mxu0 %v2060
        %2167 = vmatprep.subr.bf16.mxu0 %v2065
        %2168 = vmatpush1.bf16.msra.mxu0 %v2064
        %2169 = vmatprep.subr.bf16.mxu0 %v2069
        %2170 = vmatpush1.bf16.msra.mxu0 %v2068
        %2171 = vmatprep.subr.bf16.mxu0 %v2073
        %2172 = vmatpush1.bf16.msra.mxu0 %v2072
        %2173 = vmatprep.subr.bf16.mxu0 %v2077
        %2174 = vmatpush1.bf16.msra.mxu0 %v2076
        %2175 = vmatprep.subr.bf16.mxu0 %v2081
        %2176 = vmatpush1.bf16.msra.mxu0 %v2080
        %2177 = vmatprep.subr.bf16.mxu0 %v2085
        %2178 = vmatpush1.bf16.msra.mxu0 %v2084
        %2179 = vmatprep.subr.bf16.mxu0 %v2089
        %2180 = vmatpush1.bf16.msra.mxu0 %v2088
        %2181 = vmatprep.subr.bf16.mxu0 %v2093
        %2182 = vmatpush1.bf16.msra.mxu0 %v2092
        %2183 = vmatprep.subr.bf16.mxu0 %v2097
        %2184 = vmatpush1.bf16.msra.mxu0 %v2096
        %2185 = vmatprep.subr.bf16.mxu0 %v2101
        %2186 = vmatpush1.bf16.msra.mxu0 %v2100
        %2187 = vmatprep.mubr.bf16.mxu0 %v670
        %2188 = vmatmul.mubr.bf16.gmra.mrb[0].mxu0 %v669
        %v2189 = vpop.f32.mrb[0].mxu0
        %v2190 = vadd.f32 0.0, %v2189
        %v2191 = vpop.f32.mrb[0].mxu0
        %v2192 = vadd.f32 0.0, %v2191
        %v2193 = vpop.f32.mrb[0].mxu0
        %v2194 = vadd.f32 0.0, %v2193
        %v2195 = vpop.f32.mrb[0].mxu0
        %v2196 = vadd.f32 0.0, %v2195
        %2197 = vmatprep.mubr.bf16.mxu0 %v672
        %2198 = vmatmul.mubr.bf16.gmra.mrb[0].mxu0 %v671
        %v2199 = vpop.f32.mrb[0].mxu0
        %v2200 = vadd.f32 0.0, %v2199
        %v2201 = vpop.f32.mrb[0].mxu0
        %v2202 = vadd.f32 0.0, %v2201
        %v2203 = vpop.f32.mrb[0].mxu0
        %v2204 = vadd.f32 0.0, %v2203
        %v2205 = vpop.f32.mrb[0].mxu0
        %v2206 = vadd.f32 0.0, %v2205
        %2207 = vdwg.mxu0
        %v2208 = vadd.f32 %v2022, %v2137
        %v2209 = vadd.f32 %v2023, %v2139
        %v2210 = vadd.f32 %v2024, %v2190
        %v2211 = vadd.f32 %v2025, %v2192
        %v2212 = vadd.f32 %v2026, %v2141
        %v2213 = vadd.f32 %v2027, %v2143
        %v2214 = vadd.f32 %v2028, %v2194
        %v2215 = vadd.f32 %v2029, %v2196
        %v2216 = vadd.f32 %v2030, %v2147
        %v2217 = vadd.f32 %v2031, %v2149
        %v2218 = vadd.f32 %v2032, %v2200
        %v2219 = vadd.f32 %v2033, %v2202
        %v2220 = vadd.f32 %v2034, %v2151
        %v2221 = vadd.f32 %v2035, %v2153
        %v2222 = vadd.f32 %v2036, %v2204
        %v2223 = vadd.f32 %v2037, %v2206
        %2224 = vst [vmem:[#allocation5] sm:$0xff] %v2208
        %2225 = vst [vmem:[#allocation5 + $0x8] sm:$0xff] %v2209
        %2226 = vst [vmem:[#allocation5 + $0x10] sm:$0xff] %v2210
        %2227 = vst [vmem:[#allocation5 + $0x18] sm:$0xff] %v2211
        %2228 = vst [vmem:[#allocation5 + $0x20] sm:$0xff] %v2212
        %2229 = vst [vmem:[#allocation5 + $0x28] sm:$0xff] %v2213
        %2230 = vst [vmem:[#allocation5 + $0x30] sm:$0xff] %v2214
        %2231 = vst [vmem:[#allocation5 + $0x38] sm:$0xff] %v2215
        %2232 = vst [vmem:[#allocation5 + $0x40] sm:$0xff] %v2216
        %2233 = vst [vmem:[#allocation5 + $0x48] sm:$0xff] %v2217
        %2234 = vst [vmem:[#allocation5 + $0x50] sm:$0xff] %v2218
        %2235 = vst [vmem:[#allocation5 + $0x58] sm:$0xff] %v2219
        %2236 = vst [vmem:[#allocation5 + $0x60] sm:$0xff] %v2220
        %2237 = vst [vmem:[#allocation5 + $0x68] sm:$0xff] %v2221
        %2238 = vst [vmem:[#allocation5 + $0x70] sm:$0xff] %v2222
        %2239 = vst [vmem:[#allocation5 + $0x78] sm:$0xff] %v2223
        %2240 = vst.msk [vmem:[#allocation3] sm:$0xf] %vm1983, %v1391
        %p2241 = scmp.eq.s32.totalorder %s33, 1
        // Predicated region
        $region57: #{tpu_custom_call.1} parent=43 // pred_check
          %p2242 = pneg %p2241
        $region58: #{tpu_custom_call.1} parent=43 // pred_check_branch
          %2244 = sbr.rel (%p2242) target = $region60
        $region59: #{tpu_custom_call.1} parent=43 // pred_region
          %v2245 = vld [vmem:[#allocation4] sm:$0xf]
          %v2246 = vrcp.pop %v2245
          %v2247 = vld [vmem:[#allocation5] sm:$0xff]
          %v2248 = vld [vmem:[#allocation5 + $0x8] sm:$0xff]
          %v2249 = vld [vmem:[#allocation5 + $0x10] sm:$0xff]
          %v2250 = vld [vmem:[#allocation5 + $0x18] sm:$0xff]
          %v2251 = vld [vmem:[#allocation5 + $0x20] sm:$0xff]
          %v2252 = vld [vmem:[#allocation5 + $0x28] sm:$0xff]
          %v2253 = vld [vmem:[#allocation5 + $0x30] sm:$0xff]
          %v2254 = vld [vmem:[#allocation5 + $0x38] sm:$0xff]
          %v2255 = vld [vmem:[#allocation5 + $0x40] sm:$0xff]
          %v2256 = vld [vmem:[#allocation5 + $0x48] sm:$0xff]
          %v2257 = vld [vmem:[#allocation5 + $0x50] sm:$0xff]
          %v2258 = vld [vmem:[#allocation5 + $0x58] sm:$0xff]
          %v2259 = vld [vmem:[#allocation5 + $0x60] sm:$0xff]
          %v2260 = vld [vmem:[#allocation5 + $0x68] sm:$0xff]
          %v2261 = vld [vmem:[#allocation5 + $0x70] sm:$0xff]
          %v2262 = vld [vmem:[#allocation5 + $0x78] sm:$0xff]
          %v2264 = vlaneseq
          %v2265 = vshrl.u32 %v2264, 7
          %v2266 = vsub.s32 0, %v2265
          %v2267 = vrot.slane %v2246, %v2266
          %v2268 = vlaneseq
          %v2269 = vshrl.u32 %v2268, 7
          %v2270 = vsub.s32 1, %v2269
          %v2271 = vrot.slane %v2246, %v2270
          %v2272 = vlaneseq
          %v2273 = vshrl.u32 %v2272, 7
          %v2274 = vsub.s32 2, %v2273
          %v2275 = vrot.slane %v2246, %v2274
          %v2276 = vlaneseq
          %v2277 = vshrl.u32 %v2276, 7
          %v2278 = vsub.s32 3, %v2277
          %v2279 = vrot.slane %v2246, %v2278
          %v2284 = vmul.f32 %v2247, %v2267
          %v2285 = vmul.f32 %v2248, %v2271
          %v2286 = vmul.f32 %v2249, %v2275
          %v2287 = vmul.f32 %v2250, %v2279
          %v2288 = vmul.f32 %v2251, %v2267
          %v2289 = vmul.f32 %v2252, %v2271
          %v2290 = vmul.f32 %v2253, %v2275
          %v2291 = vmul.f32 %v2254, %v2279
          %v2292 = vmul.f32 %v2255, %v2267
          %v2293 = vmul.f32 %v2256, %v2271
          %v2294 = vmul.f32 %v2257, %v2275
          %v2295 = vmul.f32 %v2258, %v2279
          %v2296 = vmul.f32 %v2259, %v2267
          %v2297 = vmul.f32 %v2260, %v2271
          %v2298 = vmul.f32 %v2261, %v2275
          %v2299 = vmul.f32 %v2262, %v2279
          %v2300 = vld [vmem:[%s5] sm:$0xff]
          %v2301 = vld [vmem:[%s5 + $0x8] sm:$0xff]
          %v2302 = vld [vmem:[%s5 + $0x10] sm:$0xff]
          %v2303 = vld [vmem:[%s5 + $0x18] sm:$0xff]
          %2305 = vset.pattern.permute.xlu0 0
          %2306 = vperm.xlu0 %2305, %v2300
          %v2307 = vpop.permute.xlu0 %2306
          %2310 = vset.pattern.permute.xlu0 0
          %2311 = vperm.xlu0 %2310, %v2301
          %v2312 = vpop.permute.xlu0 %2311
          %2315 = vset.pattern.permute.xlu0 0
          %2316 = vperm.xlu0 %2315, %v2302
          %v2317 = vpop.permute.xlu0 %2316
          %2320 = vset.pattern.permute.xlu0 0
          %2321 = vperm.xlu0 %2320, %v2303
          %v2322 = vpop.permute.xlu0 %2321
          %v2324 = vadd.f32 %v2284, %v2307
          %v2325 = vadd.f32 %v2285, %v2307
          %v2326 = vadd.f32 %v2286, %v2307
          %v2327 = vadd.f32 %v2287, %v2307
          %v2328 = vadd.f32 %v2288, %v2312
          %v2329 = vadd.f32 %v2289, %v2312
          %v2330 = vadd.f32 %v2290, %v2312
          %v2331 = vadd.f32 %v2291, %v2312
          %v2332 = vadd.f32 %v2292, %v2317
          %v2333 = vadd.f32 %v2293, %v2317
          %v2334 = vadd.f32 %v2294, %v2317
          %v2335 = vadd.f32 %v2295, %v2317
          %v2336 = vadd.f32 %v2296, %v2322
          %v2337 = vadd.f32 %v2297, %v2322
          %v2338 = vadd.f32 %v2298, %v2322
          %v2339 = vadd.f32 %v2299, %v2322
          %v2340 = vld [vmem:[%s296] sm:$0xff]
          %v2341 = vld [vmem:[%s296 + $0x8] sm:$0xff]
          %v2342 = vld [vmem:[%s296 + $0x10] sm:$0xff]
          %v2343 = vld [vmem:[%s296 + $0x18] sm:$0xff]
          %v2344 = vld [vmem:[%s296 + $0x20] sm:$0xff]
          %v2345 = vld [vmem:[%s296 + $0x28] sm:$0xff]
          %v2346 = vld [vmem:[%s296 + $0x30] sm:$0xff]
          %v2347 = vld [vmem:[%s296 + $0x38] sm:$0xff]
          %v2348 = vld [vmem:[%s296 + $0x40] sm:$0xff]
          %v2349 = vld [vmem:[%s296 + $0x48] sm:$0xff]
          %v2350 = vld [vmem:[%s296 + $0x50] sm:$0xff]
          %v2351 = vld [vmem:[%s296 + $0x58] sm:$0xff]
          %v2352 = vld [vmem:[%s296 + $0x60] sm:$0xff]
          %v2353 = vld [vmem:[%s296 + $0x68] sm:$0xff]
          %v2354 = vld [vmem:[%s296 + $0x70] sm:$0xff]
          %v2355 = vld [vmem:[%s296 + $0x78] sm:$0xff]
          %v2356 = vadd.f32 %v2324, %v2340
          %v2357 = vadd.f32 %v2325, %v2341
          %v2358 = vadd.f32 %v2326, %v2342
          %v2359 = vadd.f32 %v2327, %v2343
          %v2360 = vadd.f32 %v2328, %v2344
          %v2361 = vadd.f32 %v2329, %v2345
          %v2362 = vadd.f32 %v2330, %v2346
          %v2363 = vadd.f32 %v2331, %v2347
          %v2364 = vadd.f32 %v2332, %v2348
          %v2365 = vadd.f32 %v2333, %v2349
          %v2366 = vadd.f32 %v2334, %v2350
          %v2367 = vadd.f32 %v2335, %v2351
          %v2368 = vadd.f32 %v2336, %v2352
          %v2369 = vadd.f32 %v2337, %v2353
          %v2370 = vadd.f32 %v2338, %v2354
          %v2371 = vadd.f32 %v2339, %v2355
          %2372 = vst [vmem:[%s338] sm:$0xff] %v2356
          %2373 = vst [vmem:[%s338 + $0x8] sm:$0xff] %v2357
          %2374 = vst [vmem:[%s338 + $0x10] sm:$0xff] %v2358
          %2375 = vst [vmem:[%s338 + $0x18] sm:$0xff] %v2359
          %2376 = vst [vmem:[%s338 + $0x20] sm:$0xff] %v2360
          %2377 = vst [vmem:[%s338 + $0x28] sm:$0xff] %v2361
          %2378 = vst [vmem:[%s338 + $0x30] sm:$0xff] %v2362
          %2379 = vst [vmem:[%s338 + $0x38] sm:$0xff] %v2363
          %2380 = vst [vmem:[%s338 + $0x40] sm:$0xff] %v2364
          %2381 = vst [vmem:[%s338 + $0x48] sm:$0xff] %v2365
          %2382 = vst [vmem:[%s338 + $0x50] sm:$0xff] %v2366
          %2383 = vst [vmem:[%s338 + $0x58] sm:$0xff] %v2367
          %2384 = vst [vmem:[%s338 + $0x60] sm:$0xff] %v2368
          %2385 = vst [vmem:[%s338 + $0x68] sm:$0xff] %v2369
          %2386 = vst [vmem:[%s338 + $0x70] sm:$0xff] %v2370
          %2387 = vst [vmem:[%s338 + $0x78] sm:$0xff] %v2371
        $region60: #{tpu_custom_call.1} parent=43 // pred_fallthru
          _
        %s2388 = sand.u32 %s195, 1
        %s2389 = scalar_lea.sflag [#allocation8], %s2388
        %s2390 = sand.u32 %s195, 1
        %s2391 = smul.addr %s2390, 128
        %s2392 = scalar_lea.vmem [#allocation11], %s2391
        // Predicated region
        $region61: #{tpu_custom_call.1} parent=43 // pred_check
          %p2393 = pneg %p205
        $region62: #{tpu_custom_call.1} parent=43 // pred_check_branch
          %2395 = sbr.rel (%p2393) target = $region64
        $region63: #{tpu_custom_call.1} parent=43 // pred_region
          %s2396 = smul.u32 4, %s32
          %s2398 = ssub.s32 2048, 2048
          %2399 = vsyncadd %s2389, %s2398
          %s2400 = smul.addr %s31, 16
          %s2401 = sadd.s32 %s2396, %s2400
          %s2402 = smul.addr %s2401, 128
          %s2403 = scalar_lea.hbm %s6, %s2402
          %s2404 = sshll.u32 %s2392, 4
          %s2405 = int_to_ptr.vmem [resolvable:$true] %s2404
          %2410 = dma.vmem_to_hbm [thread:$0]  %s2405, 2048, %s2403, %s2389, 512, 512, 32
        $region64: #{tpu_custom_call.1} parent=43 // pred_fallthru
          _
      $region44: #{tpu_custom_call.1} parent=5 // pred_fallthru
        _
      %p2411 = scmp.le.s32.totalorder 2, %s21
      // Predicated region
      $region65: #{tpu_custom_call.1} parent=5 // pred_check
        %p2412 = pneg %p2411
      $region66: #{tpu_custom_call.1} parent=5 // pred_check_branch
        %2414 = sbr.rel (%p2412) target = $region68
      $region67: #{tpu_custom_call.1} parent=5 // pred_region
        %s2415 = ssub.s32 %s21, 2
        // Predicated region
        $region69: #{tpu_custom_call.1} parent=67 // pred_check
          %p2416 = pneg %p211
        $region70: #{tpu_custom_call.1} parent=67 // pred_check_branch
          %2418 = sbr.rel (%p2416) target = $region72
        $region71: #{tpu_custom_call.1} parent=67 // pred_region
          %s2419 = sand.u32 %s196, 1
          %s2420 = scalar_lea.sflag [#allocation8], %s2419
          %s2421 = sand.u32 %s196, 1
          %s2422 = smul.addr %s2421, 128
          %s2423 = scalar_lea.vmem [#allocation11], %s2422
          %2424 = dma.done %s2420, 2048
        $region72: #{tpu_custom_call.1} parent=67 // pred_fallthru
          _
      $region68: #{tpu_custom_call.1} parent=5 // pred_fallthru
        _
    $region6: #{tpu_custom_call.1} parent=1 // loop_footer
      %s25 = sadd.s32 1, %s21
    $region7: #{tpu_custom_call.1} parent=1 // loop_footer_branch
      %20 = sbr.rel target = $region3
    $region8: #{tpu_custom_call.1} parent=1 // loop_exit
      _
    %2425 = vsyncpa [#allocation7], 1
    %s2426 = scalar_lea.sflag [#allocation7], 1
    %2427 = vsyncpa %s2426, 1
    %2428 = vsyncpa [#allocation10], 1
    %s2429 = scalar_lea.sflag [#allocation10], 1
    %2430 = vsyncpa %s2429, 1
    %2431 = vsyncpa [#allocation8], 1
    %s2432 = scalar_lea.sflag [#allocation8], 1
    %2433 = vsyncpa %s2432, 1

</llo_original>
